<compile_context>
chip_gen: v6e
topology: v6e:2x2x1
jax: 0.10.0
libtpu: 0.0.40
codegen_flags: <defaults>
</compile_context>

<pallas_src>
import functools

import jax
import jax.numpy as jnp
from jax import lax
from jax.experimental import pallas as pl
from jax.experimental.pallas import tpu as pltpu


def _emb_size(feature_max: int) -> int:
    return int(feature_max ** 0.5) + 1


def _round_up(n: int, m: int) -> int:
    return ((n + m - 1) // m) * m


# ----------------------------- Pallas kernel ------------------------------- #
def _lstm_kernel(x_ref, wih_ref, whh_ref, b_ref, wout_ref, bout_ref,
                 out_ref, gx_sc, hs_sc, *,
                 hidden_size: int, batch: int, seq_len: int,
                 stateful: bool, unroll: bool):
    """Single-layer LSTM (PyTorch gate order i,f,g,o) + Linear head, fully in VMEM.

    x_ref   : (T*Bp, D)   f32   flattened time-major embedded input (Bp = padded batch)
    wih_ref : (D, 4H)     f32   input-to-hidden weights (transposed vs. torch)
    whh_ref : (H, 4H)     f32   hidden-to-hidden weights
    b_ref   : (1, 4H)     f32   b_ih + b_hh
    wout_ref: (H, Op)     f32   output Linear weight, lane-padded (transposed vs. torch)
    bout_ref: (1, Op)     f32   output Linear bias, lane-padded (-1e30 on pad cols if stateful)
    out_ref : (T*Bp, Op)  f32   logits (or softmax probs if stateful)
    gx_sc   : (T*Bp, 4H)  f32   scratch: precomputed x@W_ih + b for all timesteps
    hs_sc   : (T*Bp, H)   f32   scratch: h_t collected per step for the hoisted head
    """
    H = hidden_size
    B = batch          # sublane-aligned (multiple of 8)
    T = seq_len

    # (1) Input projection for ALL timesteps in one MXU matmul; bias folded in here so
    #     nothing needs to be (re-)broadcast inside the recurrence.
    gx_sc[...] = (jnp.dot(x_ref[...], wih_ref[...],
                          preferred_element_type=jnp.float32)
                  + b_ref[...])

    # Hoist loop-invariant VMEM loads / masks out of the recurrence.
    whh = whh_ref[...]                                   # (H, 4H)
    lane = lax.broadcasted_iota(jnp.int32, (B, 4 * H), 1)
    g_mask = (lane >= 2 * H) & (lane < 3 * H)            # lanes of the g (cell) gate

    # (2) Recurrence: only h @ W_hh + elementwise gate math on the critical path.
    def step(t, carry):
        h, c = carry                                      # (B, H) each, live in vregs
        row = pl.multiple_of(t * B, 8)                    # sublane-aligned row offset
        gates = gx_sc[pl.ds(row, B), :] + jnp.dot(
            h, whh, preferred_element_type=jnp.float32)   # (B, 4H)

        # Full-width activations (2 EUP passes on a full vreg) + lane select,
        # instead of four padded 32-lane transcendentals.
        act = jnp.where(g_mask, jnp.tanh(gates), jax.nn.sigmoid(gates))
        i_g = act[:, 0 * H:1 * H]
        f_g = act[:, 1 * H:2 * H]
        g_g = act[:, 2 * H:3 * H]
        o_g = act[:, 3 * H:4 * H]

        c_new = f_g * c + i_g * g_g
        h_new = o_g * jnp.tanh(c_new)
        hs_sc[pl.ds(row, B), :] = h_new
        return (h_new, c_new)

    # nn.LSTM with zeroed hidden state at each forward (stateful=False semantics).
    h0 = jnp.zeros((B, H), jnp.float32)
    c0 = jnp.zeros((B, H), jnp.float32)
    lax.fori_loop(0, T, step, (h0, c0), unroll=unroll)

    # (3) Output head hoisted out of the loop: one matmul over all timesteps, optional
    #     softmax on full vregs, one bulk lane-dense store.
    logits = (jnp.dot(hs_sc[...], wout_ref[...],
                      preferred_element_type=jnp.float32)
              + bout_ref[...])                            # (T*Bp, Op)
    if stateful:
        # Padded output columns carry a -1e30 bias, so they contribute ~0 to the softmax.
        logits = jax.nn.softmax(logits, axis=-1)
    out_ref[...] = logits


# ------------------------------ JAX wrapper -------------------------------- #
def lstm_model_forward(x, params, *, hidden_size: int, stateful: bool = False):
    """Forward pass equivalent to LSTMModel.forward (stateful flag controls softmax)."""
    # Embedding lookups (glue): (B, T) gather -> (B, T, e)
    emb_week = jnp.take(params["emb_week"], x[:, :, 0], axis=0)
    emb_trans = jnp.take(params["emb_trans"], x[:, :, 1], axis=0)
    seq = jnp.concatenate([emb_week, emb_trans], axis=-1)        # (B, T, D)
    seq_tm = jnp.transpose(seq, (1, 0, 2)).astype(jnp.float32)   # (T, B, D) time-major

    B, T = x.shape[0], x.shape[1]
    D = seq_tm.shape[-1]
    n_out = params["w_out"].shape[-1]
    H = hidden_size

    Bp = _round_up(max(B, 8), 8)      # sublane-aligned batch (f32 sublane = 8)
    Op = _round_up(n_out, 128)        # lane-dense output width (unmasked vst)

    seq_p = jnp.pad(seq_tm, ((0, 0), (0, Bp - B), (0, 0)))       # (T, Bp, D)
    x_flat = seq_p.reshape(T * Bp, D)                            # flattened for one big matmul

    w_out_p = jnp.pad(params["w_out"], ((0, 0), (0, Op - n_out)))
    # For the stateful/softmax path, padded logit columns must not perturb the softmax.
    pad_bias = -1e30 if stateful else 0.0
    b_out_p = jnp.pad(params["b_out"], ((0, 0), (0, Op - n_out)),
                      constant_values=pad_bias)

    kernel = functools.partial(
        _lstm_kernel, hidden_size=H, batch=Bp, seq_len=T,
        stateful=stateful, unroll=bool(T <= 32))

    # TODO(synk): for much larger T/B, tile T with a BlockSpec grid axis ("arbitrary",
    # h/c carried in scratch) and shard batch across v7x's two TensorCores; unnecessary
    # at this footprint (everything fits comfortably in VMEM).
    out_flat = pl.pallas_call(
        kernel,
        out_shape=jax.ShapeDtypeStruct((T * Bp, Op), jnp.float32),
        in_specs=[pl.BlockSpec(memory_space=pltpu.MemorySpace.VMEM)] * 6,
        out_specs=pl.BlockSpec(memory_space=pltpu.MemorySpace.VMEM),
        scratch_shapes=[pltpu.VMEM((T * Bp, 4 * H), jnp.float32),
                        pltpu.VMEM((T * Bp, H), jnp.float32)],
    )(x_flat, params["w_ih"], params["w_hh"], params["b"], w_out_p, b_out_p)

    # Strip batch/output padding (XLA glue) and return batch-first like PyTorch.
    out = out_flat.reshape(T, Bp, Op)[:, :B, :n_out]
    return jnp.transpose(out, (1, 0, 2))                         # (B, T, max_trans)


# --------------------------- Pure-JAX reference ----------------------------- #
def _reference_forward(x, params, *, hidden_size: int, stateful: bool = False):
    emb_week = jnp.take(params["emb_week"], x[:, :, 0], axis=0)
    emb_trans = jnp.take(params["emb_trans"], x[:, :, 1], axis=0)
    seq = jnp.concatenate([emb_week, emb_trans], axis=-1)        # (B, T, D)
    B = x.shape[0]
    H = hidden_size

    def step(carry, x_t):
        h, c = carry
        gates = x_t @ params["w_ih"] + h @ params["w_hh"] + params["b"][0]
        i_g = jax.nn.sigmoid(gates[:, 0 * H:1 * H])
        f_g = jax.nn.sigmoid(gates[:, 1 * H:2 * H])
        g_g = jnp.tanh(gates[:, 2 * H:3 * H])
        o_g = jax.nn.sigmoid(gates[:, 3 * H:4 * H])
        c_new = f_g * c + i_g * g_g
        h_new = o_g * jnp.tanh(c_new)
        return (h_new, c_new), h_new

    h0 = jnp.zeros((B, H), jnp.float32)
    c0 = jnp.zeros((B, H), jnp.float32)
    _, hs = lax.scan(step, (h0, c0), jnp.transpose(seq, (1, 0, 2)))
    out = jnp.einsum("tbh,ho->tbo", hs, params["w_out"]) + params["b_out"][0]
    if stateful:
        out = jax.nn.softmax(out, axis=-1)
    return jnp.transpose(out, (1, 0, 2))


# ---------------------------- Parameter setup ------------------------------ #
def init_params(key, max_weeks, max_trans, hidden_size):
    e1, e2 = _emb_size(max_weeks), _emb_size(max_trans)
    d_in = e1 + e2
    ks = jax.random.split(key, 8)
    scale = 0.1
    # TODO(synk): bf16 weight/activation casts for the MXU dots were intentionally skipped
    #             to keep exact f32 parity with the PyTorch module at these tiny shapes.
    return {
        "emb_week":  scale * jax.random.normal(ks[0], (max_weeks, e1), jnp.float32),
        "emb_trans": scale * jax.random.normal(ks[1], (max_trans, e2), jnp.float32),
        # Stored transposed relative to torch (weight_ih_l0 is (4H, D)):
        "w_ih":  scale * jax.random.normal(ks[2], (d_in, 4 * hidden_size), jnp.float32),
        "w_hh":  scale * jax.random.normal(ks[3], (hidden_size, 4 * hidden_size), jnp.float32),
        # b = b_ih + b_hh, kept 2D (1, 4H) for lane-friendly broadcast:
        "b":     scale * jax.random.normal(ks[4], (1, 4 * hidden_size), jnp.float32),
        "w_out": scale * jax.random.normal(ks[5], (hidden_size, max_trans), jnp.float32),
        "b_out": scale * jax.random.normal(ks[6], (1, max_trans), jnp.float32),
    }


if __name__ == "__main__":
    # Small, module-consistent shapes.
    MAX_WEEKS = 52
    MAX_TRANS = 16
    HIDDEN = 32
    B, T = 2, 8
    # TODO(synk): stateful=True between-call hidden-state carry is inherently Python-object
    #             state in the torch module; here the flag only toggles the in-kernel softmax.

    key = jax.random.PRNGKey(0)
    pkey, xkey1, xkey2 = jax.random.split(key, 3)
    params = init_params(pkey, MAX_WEEKS, MAX_TRANS, HIDDEN)

    week_idx = jax.random.randint(xkey1, (B, T, 1), 0, MAX_WEEKS, dtype=jnp.int32)
    trans_idx = jax.random.randint(xkey2, (B, T, 1), 0, MAX_TRANS, dtype=jnp.int32)
    x = jnp.concatenate([week_idx, trans_idx], axis=-1)          # (B, T, 2) int32

    # stateful=False path (raw logits).
    out = lstm_model_forward(x, params, hidden_size=HIDDEN, stateful=False)
    out = jax.block_until_ready(out)
    ref = _reference_forward(x, params, hidden_size=HIDDEN, stateful=False)
    assert out.shape == (B, T, MAX_TRANS), out.shape
    assert jnp.allclose(out, ref, atol=1e-5, rtol=1e-5), float(jnp.max(jnp.abs(out - ref)))

    # stateful=True path (softmax over transactions), exercising the padded-column masking.
    out_s = lstm_model_forward(x, params, hidden_size=HIDDEN, stateful=True)
    out_s = jax.block_until_ready(out_s)
    ref_s = _reference_forward(x, params, hidden_size=HIDDEN, stateful=True)
    assert out_s.shape == (B, T, MAX_TRANS), out_s.shape
    assert jnp.allclose(out_s, ref_s, atol=1e-5, rtol=1e-5), float(jnp.max(jnp.abs(out_s - ref_s)))

    print("KERNEL_OK")
</pallas_src>

<mosaic_0001>
module attributes {stable_mosaic.version = 11 : i64} {
  func.func @_lstm_kernel(%arg0: memref<64x13xf32, #tpu.memory_space<vmem>>, %arg1: memref<13x128xf32, #tpu.memory_space<vmem>>, %arg2: memref<32x128xf32, #tpu.memory_space<vmem>>, %arg3: memref<1x128xf32, #tpu.memory_space<vmem>>, %arg4: memref<32x128xf32, #tpu.memory_space<vmem>>, %arg5: memref<1x128xf32, #tpu.memory_space<vmem>>, %arg6: memref<64x128xf32, #tpu.memory_space<vmem>>, %arg7: memref<64x128xf32, #tpu.memory_space<vmem>>, %arg8: memref<64x32xf32, #tpu.memory_space<vmem>>) attributes {dimension_semantics = [], scalar_prefetch = 0 : i64, scratch_operands = 2 : i64, tpu.core_type = #tpu.core_type<tc>} {
    %c0 = arith.constant 0 : index
    %c0_0 = arith.constant 0 : index
    %0 = vector.load %arg0[%c0, %c0_0] : memref<64x13xf32, #tpu.memory_space<vmem>>, vector<64x13xf32>
    %c0_1 = arith.constant 0 : index
    %c0_2 = arith.constant 0 : index
    %1 = vector.load %arg1[%c0_1, %c0_2] : memref<13x128xf32, #tpu.memory_space<vmem>>, vector<13x128xf32>
    %cst = arith.constant dense<0.000000e+00> : vector<64x128xf32>
    %2 = tpu.matmul %0, %1, %cst {dimension_numbers = #tpu.dot_dimension_numbers<[1], [0], [0], [1], [0, 0, 1, 1], [], []>} : vector<64x13xf32>, vector<13x128xf32>, vector<64x128xf32> -> vector<64x128xf32>
    %c0_3 = arith.constant 0 : index
    %c0_4 = arith.constant 0 : index
    %3 = vector.load %arg3[%c0_3, %c0_4] : memref<1x128xf32, #tpu.memory_space<vmem>>, vector<1x128xf32>
    %4 = vector.broadcast %3 : vector<1x128xf32> to vector<64x128xf32>
    %5 = arith.addf %2, %4 : vector<64x128xf32>
    %c0_5 = arith.constant 0 : index
    %c0_6 = arith.constant 0 : index
    %6 = vector.load %arg7[%c0_5, %c0_6] : memref<64x128xf32, #tpu.memory_space<vmem>>, vector<64x128xf32>
    tpu.vector_store %arg7[%c0_5, %c0_6], %5 {strides = array<i32>} : memref<64x128xf32, #tpu.memory_space<vmem>>, vector<64x128xf32>,
    %c0_7 = arith.constant 0 : index
    %c0_8 = arith.constant 0 : index
    %7 = vector.load %arg2[%c0_7, %c0_8] : memref<32x128xf32, #tpu.memory_space<vmem>>, vector<32x128xf32>
    %8 = tpu.iota {dimensions = array<i32: 1>} : vector<8x128xi32>
    %c64_i32 = arith.constant 64 : i32
    %9 = vector.broadcast %c64_i32 : i32 to vector<8x128xi32>
    %10 = arith.cmpi sge, %8, %9 : vector<8x128xi32>
    %c96_i32 = arith.constant 96 : i32
    %11 = vector.broadcast %c96_i32 : i32 to vector<8x128xi32>
    %12 = arith.cmpi slt, %8, %11 : vector<8x128xi32>
    %13 = arith.andi %10, %12 : vector<8x128xi1>
    %cst_9 = arith.constant 0.000000e+00 : f32
    %14 = vector.broadcast %cst_9 : f32 to vector<8x32xf32>
    %cst_10 = arith.constant 0.000000e+00 : f32
    %15 = vector.broadcast %cst_10 : f32 to vector<8x32xf32>
    %c0_i32 = arith.constant 0 : i32
    %c8_i32 = arith.constant 8 : i32
    %16 = arith.muli %c0_i32, %c8_i32 : i32
    %17 = tpu.assume_multiple %16, 8 : i32
    %18 = arith.index_cast %17 : i32 to index
    %c0_11 = arith.constant 0 : index
    %19 = vector.load %arg7[%18, %c0_11] : memref<64x128xf32, #tpu.memory_space<vmem>>, vector<8x128xf32>
    %cst_12 = arith.constant dense<0.000000e+00> : vector<8x128xf32>
    %20 = tpu.matmul %14, %7, %cst_12 {dimension_numbers = #tpu.dot_dimension_numbers<[1], [0], [0], [1], [0, 0, 1, 1], [], []>} : vector<8x32xf32>, vector<32x128xf32>, vector<8x128xf32> -> vector<8x128xf32>
    %21 = arith.addf %19, %20 : vector<8x128xf32>
    %22 = math.tanh %21 : vector<8x128xf32>
    %23 = arith.negf %21 : vector<8x128xf32>
    %24 = math.exp %23 : vector<8x128xf32>
    %cst_13 = arith.constant 1.000000e+00 : f32
    %25 = vector.broadcast %cst_13 : f32 to vector<8x128xf32>
    %26 = arith.addf %25, %24 : vector<8x128xf32>
    %27 = arith.divf %25, %26 : vector<8x128xf32>
    %28 = arith.select %13, %22, %27 : vector<8x128xi1>, vector<8x128xf32>
    %29 = vector.extract_strided_slice %28 {offsets = [0, 0], sizes = [8, 32], strides = [1, 1]} : vector<8x128xf32> to vector<8x32xf32>
    %30 = vector.extract_strided_slice %28 {offsets = [0, 32], sizes = [8, 32], strides = [1, 1]} : vector<8x128xf32> to vector<8x32xf32>
    %31 = vector.extract_strided_slice %28 {offsets = [0, 64], sizes = [8, 32], strides = [1, 1]} : vector<8x128xf32> to vector<8x32xf32>
    %32 = vector.extract_strided_slice %28 {offsets = [0, 96], sizes = [8, 32], strides = [1, 1]} : vector<8x128xf32> to vector<8x32xf32>
    %33 = arith.mulf %30, %15 : vector<8x32xf32>
    %34 = arith.mulf %29, %31 : vector<8x32xf32>
    %35 = arith.addf %33, %34 : vector<8x32xf32>
    %36 = math.tanh %35 : vector<8x32xf32>
    %37 = arith.mulf %32, %36 : vector<8x32xf32>
    %38 = arith.index_cast %17 : i32 to index
    %c0_14 = arith.constant 0 : index
    %39 = vector.load %arg8[%38, %c0_14] : memref<64x32xf32, #tpu.memory_space<vmem>>, vector<8x32xf32>
    tpu.vector_store %arg8[%38, %c0_14], %37 {strides = array<i32>} : memref<64x32xf32, #tpu.memory_space<vmem>>, vector<8x32xf32>,
    %c1_i32 = arith.constant 1 : i32
    %c8_i32_15 = arith.constant 8 : i32
    %40 = arith.muli %c1_i32, %c8_i32_15 : i32
    %41 = tpu.assume_multiple %40, 8 : i32
    %42 = arith.index_cast %41 : i32 to index
    %c0_16 = arith.constant 0 : index
    %43 = vector.load %arg7[%42, %c0_16] : memref<64x128xf32, #tpu.memory_space<vmem>>, vector<8x128xf32>
    %cst_17 = arith.constant dense<0.000000e+00> : vector<8x128xf32>
    %44 = tpu.matmul %37, %7, %cst_17 {dimension_numbers = #tpu.dot_dimension_numbers<[1], [0], [0], [1], [0, 0, 1, 1], [], []>} : vector<8x32xf32>, vector<32x128xf32>, vector<8x128xf32> -> vector<8x128xf32>
    %45 = arith.addf %43, %44 : vector<8x128xf32>
    %46 = math.tanh %45 : vector<8x128xf32>
    %47 = arith.negf %45 : vector<8x128xf32>
    %48 = math.exp %47 : vector<8x128xf32>
    %cst_18 = arith.constant 1.000000e+00 : f32
    %49 = vector.broadcast %cst_18 : f32 to vector<8x128xf32>
    %50 = arith.addf %49, %48 : vector<8x128xf32>
    %51 = arith.divf %49, %50 : vector<8x128xf32>
    %52 = arith.select %13, %46, %51 : vector<8x128xi1>, vector<8x128xf32>
    %53 = vector.extract_strided_slice %52 {offsets = [0, 0], sizes = [8, 32], strides = [1, 1]} : vector<8x128xf32> to vector<8x32xf32>
    %54 = vector.extract_strided_slice %52 {offsets = [0, 32], sizes = [8, 32], strides = [1, 1]} : vector<8x128xf32> to vector<8x32xf32>
    %55 = vector.extract_strided_slice %52 {offsets = [0, 64], sizes = [8, 32], strides = [1, 1]} : vector<8x128xf32> to vector<8x32xf32>
    %56 = vector.extract_strided_slice %52 {offsets = [0, 96], sizes = [8, 32], strides = [1, 1]} : vector<8x128xf32> to vector<8x32xf32>
    %57 = arith.mulf %54, %35 : vector<8x32xf32>
    %58 = arith.mulf %53, %55 : vector<8x32xf32>
    %59 = arith.addf %57, %58 : vector<8x32xf32>
    %60 = math.tanh %59 : vector<8x32xf32>
    %61 = arith.mulf %56, %60 : vector<8x32xf32>
    %62 = arith.index_cast %41 : i32 to index
    %c0_19 = arith.constant 0 : index
    %63 = vector.load %arg8[%62, %c0_19] : memref<64x32xf32, #tpu.memory_space<vmem>>, vector<8x32xf32>
    tpu.vector_store %arg8[%62, %c0_19], %61 {strides = array<i32>} : memref<64x32xf32, #tpu.memory_space<vmem>>, vector<8x32xf32>,
    %c2_i32 = arith.constant 2 : i32
    %c8_i32_20 = arith.constant 8 : i32
    %64 = arith.muli %c2_i32, %c8_i32_20 : i32
    %65 = tpu.assume_multiple %64, 8 : i32
    %66 = arith.index_cast %65 : i32 to index
    %c0_21 = arith.constant 0 : index
    %67 = vector.load %arg7[%66, %c0_21] : memref<64x128xf32, #tpu.memory_space<vmem>>, vector<8x128xf32>
    %cst_22 = arith.constant dense<0.000000e+00> : vector<8x128xf32>
    %68 = tpu.matmul %61, %7, %cst_22 {dimension_numbers = #tpu.dot_dimension_numbers<[1], [0], [0], [1], [0, 0, 1, 1], [], []>} : vector<8x32xf32>, vector<32x128xf32>, vector<8x128xf32> -> vector<8x128xf32>
    %69 = arith.addf %67, %68 : vector<8x128xf32>
    %70 = math.tanh %69 : vector<8x128xf32>
    %71 = arith.negf %69 : vector<8x128xf32>
    %72 = math.exp %71 : vector<8x128xf32>
    %cst_23 = arith.constant 1.000000e+00 : f32
    %73 = vector.broadcast %cst_23 : f32 to vector<8x128xf32>
    %74 = arith.addf %73, %72 : vector<8x128xf32>
    %75 = arith.divf %73, %74 : vector<8x128xf32>
    %76 = arith.select %13, %70, %75 : vector<8x128xi1>, vector<8x128xf32>
    %77 = vector.extract_strided_slice %76 {offsets = [0, 0], sizes = [8, 32], strides = [1, 1]} : vector<8x128xf32> to vector<8x32xf32>
    %78 = vector.extract_strided_slice %76 {offsets = [0, 32], sizes = [8, 32], strides = [1, 1]} : vector<8x128xf32> to vector<8x32xf32>
    %79 = vector.extract_strided_slice %76 {offsets = [0, 64], sizes = [8, 32], strides = [1, 1]} : vector<8x128xf32> to vector<8x32xf32>
    %80 = vector.extract_strided_slice %76 {offsets = [0, 96], sizes = [8, 32], strides = [1, 1]} : vector<8x128xf32> to vector<8x32xf32>
    %81 = arith.mulf %78, %59 : vector<8x32xf32>
    %82 = arith.mulf %77, %79 : vector<8x32xf32>
    %83 = arith.addf %81, %82 : vector<8x32xf32>
    %84 = math.tanh %83 : vector<8x32xf32>
    %85 = arith.mulf %80, %84 : vector<8x32xf32>
    %86 = arith.index_cast %65 : i32 to index
    %c0_24 = arith.constant 0 : index
    %87 = vector.load %arg8[%86, %c0_24] : memref<64x32xf32, #tpu.memory_space<vmem>>, vector<8x32xf32>
    tpu.vector_store %arg8[%86, %c0_24], %85 {strides = array<i32>} : memref<64x32xf32, #tpu.memory_space<vmem>>, vector<8x32xf32>,
    %c3_i32 = arith.constant 3 : i32
    %c8_i32_25 = arith.constant 8 : i32
    %88 = arith.muli %c3_i32, %c8_i32_25 : i32
    %89 = tpu.assume_multiple %88, 8 : i32
    %90 = arith.index_cast %89 : i32 to index
    %c0_26 = arith.constant 0 : index
    %91 = vector.load %arg7[%90, %c0_26] : memref<64x128xf32, #tpu.memory_space<vmem>>, vector<8x128xf32>
    %cst_27 = arith.constant dense<0.000000e+00> : vector<8x128xf32>
    %92 = tpu.matmul %85, %7, %cst_27 {dimension_numbers = #tpu.dot_dimension_numbers<[1], [0], [0], [1], [0, 0, 1, 1], [], []>} : vector<8x32xf32>, vector<32x128xf32>, vector<8x128xf32> -> vector<8x128xf32>
    %93 = arith.addf %91, %92 : vector<8x128xf32>
    %94 = math.tanh %93 : vector<8x128xf32>
    %95 = arith.negf %93 : vector<8x128xf32>
    %96 = math.exp %95 : vector<8x128xf32>
    %cst_28 = arith.constant 1.000000e+00 : f32
    %97 = vector.broadcast %cst_28 : f32 to vector<8x128xf32>
    %98 = arith.addf %97, %96 : vector<8x128xf32>
    %99 = arith.divf %97, %98 : vector<8x128xf32>
    %100 = arith.select %13, %94, %99 : vector<8x128xi1>, vector<8x128xf32>
    %101 = vector.extract_strided_slice %100 {offsets = [0, 0], sizes = [8, 32], strides = [1, 1]} : vector<8x128xf32> to vector<8x32xf32>
    %102 = vector.extract_strided_slice %100 {offsets = [0, 32], sizes = [8, 32], strides = [1, 1]} : vector<8x128xf32> to vector<8x32xf32>
    %103 = vector.extract_strided_slice %100 {offsets = [0, 64], sizes = [8, 32], strides = [1, 1]} : vector<8x128xf32> to vector<8x32xf32>
    %104 = vector.extract_strided_slice %100 {offsets = [0, 96], sizes = [8, 32], strides = [1, 1]} : vector<8x128xf32> to vector<8x32xf32>
    %105 = arith.mulf %102, %83 : vector<8x32xf32>
    %106 = arith.mulf %101, %103 : vector<8x32xf32>
    %107 = arith.addf %105, %106 : vector<8x32xf32>
    %108 = math.tanh %107 : vector<8x32xf32>
    %109 = arith.mulf %104, %108 : vector<8x32xf32>
    %110 = arith.index_cast %89 : i32 to index
    %c0_29 = arith.constant 0 : index
    %111 = vector.load %arg8[%110, %c0_29] : memref<64x32xf32, #tpu.memory_space<vmem>>, vector<8x32xf32>
    tpu.vector_store %arg8[%110, %c0_29], %109 {strides = array<i32>} : memref<64x32xf32, #tpu.memory_space<vmem>>, vector<8x32xf32>,
    %c4_i32 = arith.constant 4 : i32
    %c8_i32_30 = arith.constant 8 : i32
    %112 = arith.muli %c4_i32, %c8_i32_30 : i32
    %113 = tpu.assume_multiple %112, 8 : i32
    %114 = arith.index_cast %113 : i32 to index
    %c0_31 = arith.constant 0 : index
    %115 = vector.load %arg7[%114, %c0_31] : memref<64x128xf32, #tpu.memory_space<vmem>>, vector<8x128xf32>
    %cst_32 = arith.constant dense<0.000000e+00> : vector<8x128xf32>
    %116 = tpu.matmul %109, %7, %cst_32 {dimension_numbers = #tpu.dot_dimension_numbers<[1], [0], [0], [1], [0, 0, 1, 1], [], []>} : vector<8x32xf32>, vector<32x128xf32>, vector<8x128xf32> -> vector<8x128xf32>
    %117 = arith.addf %115, %116 : vector<8x128xf32>
    %118 = math.tanh %117 : vector<8x128xf32>
    %119 = arith.negf %117 : vector<8x128xf32>
    %120 = math.exp %119 : vector<8x128xf32>
    %cst_33 = arith.constant 1.000000e+00 : f32
    %121 = vector.broadcast %cst_33 : f32 to vector<8x128xf32>
    %122 = arith.addf %121, %120 : vector<8x128xf32>
    %123 = arith.divf %121, %122 : vector<8x128xf32>
    %124 = arith.select %13, %118, %123 : vector<8x128xi1>, vector<8x128xf32>
    %125 = vector.extract_strided_slice %124 {offsets = [0, 0], sizes = [8, 32], strides = [1, 1]} : vector<8x128xf32> to vector<8x32xf32>
    %126 = vector.extract_strided_slice %124 {offsets = [0, 32], sizes = [8, 32], strides = [1, 1]} : vector<8x128xf32> to vector<8x32xf32>
    %127 = vector.extract_strided_slice %124 {offsets = [0, 64], sizes = [8, 32], strides = [1, 1]} : vector<8x128xf32> to vector<8x32xf32>
    %128 = vector.extract_strided_slice %124 {offsets = [0, 96], sizes = [8, 32], strides = [1, 1]} : vector<8x128xf32> to vector<8x32xf32>
    %129 = arith.mulf %126, %107 : vector<8x32xf32>
    %130 = arith.mulf %125, %127 : vector<8x32xf32>
    %131 = arith.addf %129, %130 : vector<8x32xf32>
    %132 = math.tanh %131 : vector<8x32xf32>
    %133 = arith.mulf %128, %132 : vector<8x32xf32>
    %134 = arith.index_cast %113 : i32 to index
    %c0_34 = arith.constant 0 : index
    %135 = vector.load %arg8[%134, %c0_34] : memref<64x32xf32, #tpu.memory_space<vmem>>, vector<8x32xf32>
    tpu.vector_store %arg8[%134, %c0_34], %133 {strides = array<i32>} : memref<64x32xf32, #tpu.memory_space<vmem>>, vector<8x32xf32>,
    %c5_i32 = arith.constant 5 : i32
    %c8_i32_35 = arith.constant 8 : i32
    %136 = arith.muli %c5_i32, %c8_i32_35 : i32
    %137 = tpu.assume_multiple %136, 8 : i32
    %138 = arith.index_cast %137 : i32 to index
    %c0_36 = arith.constant 0 : index
    %139 = vector.load %arg7[%138, %c0_36] : memref<64x128xf32, #tpu.memory_space<vmem>>, vector<8x128xf32>
    %cst_37 = arith.constant dense<0.000000e+00> : vector<8x128xf32>
    %140 = tpu.matmul %133, %7, %cst_37 {dimension_numbers = #tpu.dot_dimension_numbers<[1], [0], [0], [1], [0, 0, 1, 1], [], []>} : vector<8x32xf32>, vector<32x128xf32>, vector<8x128xf32> -> vector<8x128xf32>
    %141 = arith.addf %139, %140 : vector<8x128xf32>
    %142 = math.tanh %141 : vector<8x128xf32>
    %143 = arith.negf %141 : vector<8x128xf32>
    %144 = math.exp %143 : vector<8x128xf32>
    %cst_38 = arith.constant 1.000000e+00 : f32
    %145 = vector.broadcast %cst_38 : f32 to vector<8x128xf32>
    %146 = arith.addf %145, %144 : vector<8x128xf32>
    %147 = arith.divf %145, %146 : vector<8x128xf32>
    %148 = arith.select %13, %142, %147 : vector<8x128xi1>, vector<8x128xf32>
    %149 = vector.extract_strided_slice %148 {offsets = [0, 0], sizes = [8, 32], strides = [1, 1]} : vector<8x128xf32> to vector<8x32xf32>
    %150 = vector.extract_strided_slice %148 {offsets = [0, 32], sizes = [8, 32], strides = [1, 1]} : vector<8x128xf32> to vector<8x32xf32>
    %151 = vector.extract_strided_slice %148 {offsets = [0, 64], sizes = [8, 32], strides = [1, 1]} : vector<8x128xf32> to vector<8x32xf32>
    %152 = vector.extract_strided_slice %148 {offsets = [0, 96], sizes = [8, 32], strides = [1, 1]} : vector<8x128xf32> to vector<8x32xf32>
    %153 = arith.mulf %150, %131 : vector<8x32xf32>
    %154 = arith.mulf %149, %151 : vector<8x32xf32>
    %155 = arith.addf %153, %154 : vector<8x32xf32>
    %156 = math.tanh %155 : vector<8x32xf32>
    %157 = arith.mulf %152, %156 : vector<8x32xf32>
    %158 = arith.index_cast %137 : i32 to index
    %c0_39 = arith.constant 0 : index
    %159 = vector.load %arg8[%158, %c0_39] : memref<64x32xf32, #tpu.memory_space<vmem>>, vector<8x32xf32>
    tpu.vector_store %arg8[%158, %c0_39], %157 {strides = array<i32>} : memref<64x32xf32, #tpu.memory_space<vmem>>, vector<8x32xf32>,
    %c6_i32 = arith.constant 6 : i32
    %c8_i32_40 = arith.constant 8 : i32
    %160 = arith.muli %c6_i32, %c8_i32_40 : i32
    %161 = tpu.assume_multiple %160, 8 : i32
    %162 = arith.index_cast %161 : i32 to index
    %c0_41 = arith.constant 0 : index
    %163 = vector.load %arg7[%162, %c0_41] : memref<64x128xf32, #tpu.memory_space<vmem>>, vector<8x128xf32>
    %cst_42 = arith.constant dense<0.000000e+00> : vector<8x128xf32>
    %164 = tpu.matmul %157, %7, %cst_42 {dimension_numbers = #tpu.dot_dimension_numbers<[1], [0], [0], [1], [0, 0, 1, 1], [], []>} : vector<8x32xf32>, vector<32x128xf32>, vector<8x128xf32> -> vector<8x128xf32>
    %165 = arith.addf %163, %164 : vector<8x128xf32>
    %166 = math.tanh %165 : vector<8x128xf32>
    %167 = arith.negf %165 : vector<8x128xf32>
    %168 = math.exp %167 : vector<8x128xf32>
    %cst_43 = arith.constant 1.000000e+00 : f32
    %169 = vector.broadcast %cst_43 : f32 to vector<8x128xf32>
    %170 = arith.addf %169, %168 : vector<8x128xf32>
    %171 = arith.divf %169, %170 : vector<8x128xf32>
    %172 = arith.select %13, %166, %171 : vector<8x128xi1>, vector<8x128xf32>
    %173 = vector.extract_strided_slice %172 {offsets = [0, 0], sizes = [8, 32], strides = [1, 1]} : vector<8x128xf32> to vector<8x32xf32>
    %174 = vector.extract_strided_slice %172 {offsets = [0, 32], sizes = [8, 32], strides = [1, 1]} : vector<8x128xf32> to vector<8x32xf32>
    %175 = vector.extract_strided_slice %172 {offsets = [0, 64], sizes = [8, 32], strides = [1, 1]} : vector<8x128xf32> to vector<8x32xf32>
    %176 = vector.extract_strided_slice %172 {offsets = [0, 96], sizes = [8, 32], strides = [1, 1]} : vector<8x128xf32> to vector<8x32xf32>
    %177 = arith.mulf %174, %155 : vector<8x32xf32>
    %178 = arith.mulf %173, %175 : vector<8x32xf32>
    %179 = arith.addf %177, %178 : vector<8x32xf32>
    %180 = math.tanh %179 : vector<8x32xf32>
    %181 = arith.mulf %176, %180 : vector<8x32xf32>
    %182 = arith.index_cast %161 : i32 to index
    %c0_44 = arith.constant 0 : index
    %183 = vector.load %arg8[%182, %c0_44] : memref<64x32xf32, #tpu.memory_space<vmem>>, vector<8x32xf32>
    tpu.vector_store %arg8[%182, %c0_44], %181 {strides = array<i32>} : memref<64x32xf32, #tpu.memory_space<vmem>>, vector<8x32xf32>,
    %c7_i32 = arith.constant 7 : i32
    %c8_i32_45 = arith.constant 8 : i32
    %184 = arith.muli %c7_i32, %c8_i32_45 : i32
    %185 = tpu.assume_multiple %184, 8 : i32
    %186 = arith.index_cast %185 : i32 to index
    %c0_46 = arith.constant 0 : index
    %187 = vector.load %arg7[%186, %c0_46] : memref<64x128xf32, #tpu.memory_space<vmem>>, vector<8x128xf32>
    %cst_47 = arith.constant dense<0.000000e+00> : vector<8x128xf32>
    %188 = tpu.matmul %181, %7, %cst_47 {dimension_numbers = #tpu.dot_dimension_numbers<[1], [0], [0], [1], [0, 0, 1, 1], [], []>} : vector<8x32xf32>, vector<32x128xf32>, vector<8x128xf32> -> vector<8x128xf32>
    %189 = arith.addf %187, %188 : vector<8x128xf32>
    %190 = math.tanh %189 : vector<8x128xf32>
    %191 = arith.negf %189 : vector<8x128xf32>
    %192 = math.exp %191 : vector<8x128xf32>
    %cst_48 = arith.constant 1.000000e+00 : f32
    %193 = vector.broadcast %cst_48 : f32 to vector<8x128xf32>
    %194 = arith.addf %193, %192 : vector<8x128xf32>
    %195 = arith.divf %193, %194 : vector<8x128xf32>
    %196 = arith.select %13, %190, %195 : vector<8x128xi1>, vector<8x128xf32>
    %197 = vector.extract_strided_slice %196 {offsets = [0, 0], sizes = [8, 32], strides = [1, 1]} : vector<8x128xf32> to vector<8x32xf32>
    %198 = vector.extract_strided_slice %196 {offsets = [0, 32], sizes = [8, 32], strides = [1, 1]} : vector<8x128xf32> to vector<8x32xf32>
    %199 = vector.extract_strided_slice %196 {offsets = [0, 64], sizes = [8, 32], strides = [1, 1]} : vector<8x128xf32> to vector<8x32xf32>
    %200 = vector.extract_strided_slice %196 {offsets = [0, 96], sizes = [8, 32], strides = [1, 1]} : vector<8x128xf32> to vector<8x32xf32>
    %201 = arith.mulf %198, %179 : vector<8x32xf32>
    %202 = arith.mulf %197, %199 : vector<8x32xf32>
    %203 = arith.addf %201, %202 : vector<8x32xf32>
    %204 = math.tanh %203 : vector<8x32xf32>
    %205 = arith.mulf %200, %204 : vector<8x32xf32>
    %206 = arith.index_cast %185 : i32 to index
    %c0_49 = arith.constant 0 : index
    %207 = vector.load %arg8[%206, %c0_49] : memref<64x32xf32, #tpu.memory_space<vmem>>, vector<8x32xf32>
    tpu.vector_store %arg8[%206, %c0_49], %205 {strides = array<i32>} : memref<64x32xf32, #tpu.memory_space<vmem>>, vector<8x32xf32>,
    %c8_i32_50 = arith.constant 8 : i32
    %c0_51 = arith.constant 0 : index
    %c0_52 = arith.constant 0 : index
    %208 = vector.load %arg8[%c0_51, %c0_52] : memref<64x32xf32, #tpu.memory_space<vmem>>, vector<64x32xf32>
    %c0_53 = arith.constant 0 : index
    %c0_54 = arith.constant 0 : index
    %209 = vector.load %arg4[%c0_53, %c0_54] : memref<32x128xf32, #tpu.memory_space<vmem>>, vector<32x128xf32>
    %cst_55 = arith.constant dense<0.000000e+00> : vector<64x128xf32>
    %210 = tpu.matmul %208, %209, %cst_55 {dimension_numbers = #tpu.dot_dimension_numbers<[1], [0], [0], [1], [0, 0, 1, 1], [], []>} : vector<64x32xf32>, vector<32x128xf32>, vector<64x128xf32> -> vector<64x128xf32>
    %c0_56 = arith.constant 0 : index
    %c0_57 = arith.constant 0 : index
    %211 = vector.load %arg5[%c0_56, %c0_57] : memref<1x128xf32, #tpu.memory_space<vmem>>, vector<1x128xf32>
    %212 = vector.broadcast %211 : vector<1x128xf32> to vector<64x128xf32>
    %213 = arith.addf %210, %212 : vector<64x128xf32>
    %c0_58 = arith.constant 0 : index
    %c0_59 = arith.constant 0 : index
    %214 = vector.load %arg6[%c0_58, %c0_59] : memref<64x128xf32, #tpu.memory_space<vmem>>, vector<64x128xf32>
    tpu.vector_store %arg6[%c0_58, %c0_59], %213 {strides = array<i32>} : memref<64x128xf32, #tpu.memory_space<vmem>>, vector<64x128xf32>,
    return
  }
}

</mosaic_0001>

<llo_original>
// kernel: tpu_custom_call.1
$region0: #{tpu_custom_call.1}
  #allocation0 [shape = 'u32[]', space=smem, size = 0x4, offset = 0x4, fixed_abs, tag = 'smem constant byte address 0x4 - core index']
  #allocation1 [shape = 'u32[144,128]{1,0:T(1,128)}', space=vmem, size = 0x12000, scoped, tag = 'internal scratch']
  #allocation2 [shape = 'f32[64,128]{1,0:T(8,128)}', space=vmem, size = 0x8000, scoped, tag = 'scratch operand']
  #allocation3 [shape = 'f32[64,32]{1,0:T(8,128)}', space=vmem, size = 0x8000, scoped, tag = 'scratch operand']
  %s0 = inlined_call_operand.vmem [shape: f32[64,13], index: 0, kind: input, shape index: {}]
  %s1 = inlined_call_operand.vmem [shape: f32[13,128], index: 1, kind: input, shape index: {}]
  %s2 = inlined_call_operand.vmem [shape: f32[32,128], index: 2, kind: input, shape index: {}]
  %s3 = inlined_call_operand.vmem [shape: f32[1,128], index: 3, kind: input, shape index: {}]
  %s4 = inlined_call_operand.vmem [shape: f32[32,128], index: 4, kind: input, shape index: {}]
  %s5 = inlined_call_operand.vmem [shape: f32[1,128], index: 5, kind: input, shape index: {}]
  %s6 = inlined_call_operand.hbm [shape: f32[64,128], index: 6, kind: output, shape index: {}]
  %s7 = sld [smem:[#allocation0]]
  $region34: #{tpu_custom_call.1} parent=0
    _
  %s9 = ssub.s32 1, %s7
  %s10 = scalar_select 0, %s9, %s7
  $region1: #{tpu_custom_call.1} parent=0
    #allocation4 [shape = 'u8[32768]{0}', space=vmem, size = 0x8000, scoped, tag = 'output window, operand 0, single buffered']
    #allocation5 [shape = 's32[1]{0}', space=sflag, size = 0x4, scoped, tag = 'scoped memory for tpu_custom_call.1']
    %11 = vsyncpa [#allocation5], 0
    // Predicated region
    $region2: #{tpu_custom_call.1} parent=1 // pred_check
      _
    $region3: #{tpu_custom_call.1} parent=1 // pred_check_branch
      %13 = sbr.rel (0) target = $region5
    $region4: #{tpu_custom_call.1} parent=1 // pred_region
      _
    $region5: #{tpu_custom_call.1} parent=1 // pred_fallthru
      _
    // Predicated region
    $region6: #{tpu_custom_call.1} parent=1 // pred_check
      _
    $region7: #{tpu_custom_call.1} parent=1 // pred_check_branch
      %15 = sbr.rel (0) target = $region9
    $region8: #{tpu_custom_call.1} parent=1 // pred_region
      _
    $region9: #{tpu_custom_call.1} parent=1 // pred_fallthru
      _
    // Predicated region
    $region10: #{tpu_custom_call.1} parent=1 // pred_check
      _
    $region11: #{tpu_custom_call.1} parent=1 // pred_check_branch
      %17 = sbr.rel (0) target = $region13
    $region12: #{tpu_custom_call.1} parent=1 // pred_region
      _
    $region13: #{tpu_custom_call.1} parent=1 // pred_fallthru
      _
    // Predicated region
    $region14: #{tpu_custom_call.1} parent=1 // pred_check
      _
    $region15: #{tpu_custom_call.1} parent=1 // pred_check_branch
      %19 = sbr.rel (0) target = $region17
    $region16: #{tpu_custom_call.1} parent=1 // pred_region
      _
    $region17: #{tpu_custom_call.1} parent=1 // pred_fallthru
      _
    // Predicated region
    $region18: #{tpu_custom_call.1} parent=1 // pred_check
      _
    $region19: #{tpu_custom_call.1} parent=1 // pred_check_branch
      %21 = sbr.rel (0) target = $region21
    $region20: #{tpu_custom_call.1} parent=1 // pred_region
      _
    $region21: #{tpu_custom_call.1} parent=1 // pred_fallthru
      _
    // Predicated region
    $region22: #{tpu_custom_call.1} parent=1 // pred_check
      _
    $region23: #{tpu_custom_call.1} parent=1 // pred_check_branch
      %23 = sbr.rel (0) target = $region25
    $region24: #{tpu_custom_call.1} parent=1 // pred_region
      _
    $region25: #{tpu_custom_call.1} parent=1 // pred_fallthru
      _
    %v24 = vld [vmem:[%s0] sm:$0xff]
    %v25 = vld [vmem:[%s0 + $0x8] sm:$0xff]
    %v26 = vld [vmem:[%s0 + $0x10] sm:$0xff]
    %v27 = vld [vmem:[%s0 + $0x18] sm:$0xff]
    %v28 = vld [vmem:[%s0 + $0x20] sm:$0xff]
    %v29 = vld [vmem:[%s0 + $0x28] sm:$0xff]
    %v30 = vld [vmem:[%s0 + $0x30] sm:$0xff]
    %v31 = vld [vmem:[%s0 + $0x38] sm:$0xff]
    %v32 = vld [vmem:[%s1] sm:$0xff]
    %v33 = vld [vmem:[%s1 + $0x8] sm:$0x1f]
    %v34 = vld [vmem:[%s3] sm:$0x1]
    %v36 = vlaneseq
    %v37 = vshrl.u32 %v36, 7
    %v38 = vsub.s32 0, %v37
    %v39 = vrot.slane %v34, %v38
    %vm41 = vcmask 105472
    %v43 = vsel %vm41, %v24, 0
    %v46 = vsel %vm41, %v25, 0
    %v49 = vsel %vm41, %v26, 0
    %v52 = vsel %vm41, %v27, 0
    %v55 = vsel %vm41, %v28, 0
    %v58 = vsel %vm41, %v29, 0
    %v61 = vsel %vm41, %v30, 0
    %v64 = vsel %vm41, %v31, 0
    %vm66 = vcmask 1044480
    %v68 = vsel %vm66, %v33, 0
    %70 = vmatprep.subr.mxu0 0.0
    %71 = vmatpush1.msra.mxu0 0.0
    %72 = vmatprep.subr.mxu0 0.0
    %73 = vmatpush1.msra.mxu0 0.0
    %74 = vmatprep.subr.mxu0 0.0
    %75 = vmatpush1.msra.mxu0 0.0
    %76 = vmatprep.subr.mxu0 0.0
    %77 = vmatpush1.msra.mxu0 0.0
    %78 = vmatprep.subr.mxu0 0.0
    %79 = vmatpush1.msra.mxu0 0.0
    %80 = vmatprep.subr.mxu0 0.0
    %81 = vmatpush1.msra.mxu0 0.0
    %82 = vmatprep.subr.mxu0 0.0
    %83 = vmatpush1.msra.mxu0 0.0
    %84 = vmatprep.subr.mxu0 0.0
    %85 = vmatpush1.msra.mxu0 0.0
    %86 = vmatprep.subr.mxu0 0.0
    %87 = vmatpush1.msra.mxu0 0.0
    %88 = vmatprep.subr.mxu0 0.0
    %89 = vmatpush1.msra.mxu0 0.0
    %90 = vmatprep.subr.mxu0 0.0
    %91 = vmatpush1.msra.mxu0 0.0
    %92 = vmatprep.subr.mxu0 0.0
    %93 = vmatpush1.msra.mxu0 0.0
    %94 = vmatprep.subr.mxu0 0.0
    %95 = vmatpush1.msra.mxu0 0.0
    %96 = vmatprep.subr.mxu0 0.0
    %97 = vmatpush1.msra.mxu0 0.0
    %98 = vmatprep.subr.mxu0 0.0
    %99 = vmatpush1.msra.mxu0 %v68
    %100 = vmatprep.subr.mxu0 0.0
    %101 = vmatpush1.msra.mxu0 %v32
    %102 = vmatprep.subr.mxu0 0.0
    %103 = vmatpush2.msra.mxu0 0.0
    %104 = vmatprep.subr.mxu0 0.0
    %105 = vmatpush2.msra.mxu0 0.0
    %106 = vmatprep.subr.mxu0 0.0
    %107 = vmatpush2.msra.mxu0 0.0
    %108 = vmatprep.subr.mxu0 0.0
    %109 = vmatpush2.msra.mxu0 0.0
    %110 = vmatprep.subr.mxu0 0.0
    %111 = vmatpush2.msra.mxu0 0.0
    %112 = vmatprep.subr.mxu0 0.0
    %113 = vmatpush2.msra.mxu0 0.0
    %114 = vmatprep.subr.mxu0 0.0
    %115 = vmatpush2.msra.mxu0 0.0
    %116 = vmatprep.subr.mxu0 0.0
    %117 = vmatpush2.msra.mxu0 0.0
    %118 = vmatprep.subr.mxu0 0.0
    %119 = vmatpush2.msra.mxu0 0.0
    %120 = vmatprep.subr.mxu0 0.0
    %121 = vmatpush2.msra.mxu0 0.0
    %122 = vmatprep.subr.mxu0 0.0
    %123 = vmatpush2.msra.mxu0 0.0
    %124 = vmatprep.subr.mxu0 0.0
    %125 = vmatpush2.msra.mxu0 0.0
    %126 = vmatprep.subr.mxu0 0.0
    %127 = vmatpush2.msra.mxu0 0.0
    %128 = vmatprep.subr.mxu0 0.0
    %129 = vmatpush2.msra.mxu0 0.0
    %130 = vmatprep.subr.mxu0 0.0
    %131 = vmatpush2.msra.mxu0 0.0
    %132 = vmatprep.subr.mxu0 0.0
    %133 = vmatpush2.msra.mxu0 0.0
    %134 = vmatprep.mubr.f32.mxu0 0.0
    %135 = vmatmul.mubr.f32.gmra.mxu0 %v43
    %v136 = vpop.f32.mrf.mxu0
    %v137 = vadd.f32 %v39, %v136
    %v138 = vpop.f32.mrf.mxu0
    %139 = vmatprep.mubr.f32.mxu0 0.0
    %140 = vmatmul.mubr.f32.gmra.mxu0 %v46
    %v141 = vpop.f32.mrf.mxu0
    %v142 = vadd.f32 %v39, %v141
    %v143 = vpop.f32.mrf.mxu0
    %144 = vmatprep.mubr.f32.mxu0 0.0
    %145 = vmatmul.mubr.f32.gmra.mxu0 %v49
    %v146 = vpop.f32.mrf.mxu0
    %v147 = vadd.f32 %v39, %v146
    %v148 = vpop.f32.mrf.mxu0
    %149 = vmatprep.mubr.f32.mxu0 0.0
    %150 = vmatmul.mubr.f32.gmra.mxu0 %v52
    %v151 = vpop.f32.mrf.mxu0
    %v152 = vadd.f32 %v39, %v151
    %v153 = vpop.f32.mrf.mxu0
    %154 = vmatprep.mubr.f32.mxu0 0.0
    %155 = vmatmul.mubr.f32.gmra.mxu0 %v55
    %v156 = vpop.f32.mrf.mxu0
    %v157 = vadd.f32 %v39, %v156
    %v158 = vpop.f32.mrf.mxu0
    %159 = vmatprep.mubr.f32.mxu0 0.0
    %160 = vmatmul.mubr.f32.gmra.mxu0 %v58
    %v161 = vpop.f32.mrf.mxu0
    %v162 = vadd.f32 %v39, %v161
    %v163 = vpop.f32.mrf.mxu0
    %164 = vmatprep.mubr.f32.mxu0 0.0
    %165 = vmatmul.mubr.f32.gmra.mxu0 %v61
    %v166 = vpop.f32.mrf.mxu0
    %v167 = vadd.f32 %v39, %v166
    %v168 = vpop.f32.mrf.mxu0
    %169 = vmatprep.mubr.f32.mxu0 0.0
    %170 = vmatmul.mubr.f32.gmra.mxu0 %v64
    %v171 = vpop.f32.mrf.mxu0
    %v172 = vadd.f32 %v39, %v171
    %v173 = vpop.f32.mrf.mxu0
    %174 = vdwg.mxu0
    %175 = vst [vmem:[#allocation2] sm:$0xff] %v137
    %176 = vst [vmem:[#allocation2 + $0x8] sm:$0xff] %v142
    %177 = vst [vmem:[#allocation2 + $0x10] sm:$0xff] %v147
    %178 = vst [vmem:[#allocation2 + $0x18] sm:$0xff] %v152
    %179 = vst [vmem:[#allocation2 + $0x20] sm:$0xff] %v157
    %180 = vst [vmem:[#allocation2 + $0x28] sm:$0xff] %v162
    %181 = vst [vmem:[#allocation2 + $0x30] sm:$0xff] %v167
    %182 = vst [vmem:[#allocation2 + $0x38] sm:$0xff] %v172
    %v183 = vld [vmem:[%s2] sm:$0xff]
    %v184 = vld [vmem:[%s2 + $0x8] sm:$0xff]
    %v185 = vld [vmem:[%s2 + $0x10] sm:$0xff]
    %v186 = vld [vmem:[%s2 + $0x18] sm:$0xff]
    %v187 = vlaneseq
    %v188 = vand.u32 %v187, 127
    %vm189 = vcmp.ge.s32.totalorder %v188, 64
    %vm190 = vcmp.lt.s32.totalorder %v188, 96
    %vm191 = vmand %vm189, %vm190
    %v192 = vld [vmem:[#allocation2] sm:$0xff]
    %vm193 = vcmask 261120
    %v195 = vsel %vm193, 0.0, 0
    %197 = vmatprep.subr.mxu0 0.0
    %198 = vmatpush1.msra.mxu0 0.0
    %199 = vmatprep.subr.mxu0 0.0
    %200 = vmatpush1.msra.mxu0 0.0
    %201 = vmatprep.subr.mxu0 0.0
    %202 = vmatpush1.msra.mxu0 0.0
    %203 = vmatprep.subr.mxu0 0.0
    %204 = vmatpush1.msra.mxu0 0.0
    %205 = vmatprep.subr.mxu0 0.0
    %206 = vmatpush1.msra.mxu0 0.0
    %207 = vmatprep.subr.mxu0 0.0
    %208 = vmatpush1.msra.mxu0 0.0
    %209 = vmatprep.subr.mxu0 0.0
    %210 = vmatpush1.msra.mxu0 0.0
    %211 = vmatprep.subr.mxu0 0.0
    %212 = vmatpush1.msra.mxu0 0.0
    %213 = vmatprep.subr.mxu0 0.0
    %214 = vmatpush1.msra.mxu0 0.0
    %215 = vmatprep.subr.mxu0 0.0
    %216 = vmatpush1.msra.mxu0 0.0
    %217 = vmatprep.subr.mxu0 0.0
    %218 = vmatpush1.msra.mxu0 0.0
    %219 = vmatprep.subr.mxu0 0.0
    %220 = vmatpush1.msra.mxu0 0.0
    %221 = vmatprep.subr.mxu0 0.0
    %222 = vmatpush1.msra.mxu0 %v186
    %223 = vmatprep.subr.mxu0 0.0
    %224 = vmatpush1.msra.mxu0 %v185
    %225 = vmatprep.subr.mxu0 0.0
    %226 = vmatpush1.msra.mxu0 %v184
    %227 = vmatprep.subr.mxu0 0.0
    %228 = vmatpush1.msra.mxu0 %v183
    %229 = vmatprep.subr.mxu0 0.0
    %230 = vmatpush2.msra.mxu0 0.0
    %231 = vmatprep.subr.mxu0 0.0
    %232 = vmatpush2.msra.mxu0 0.0
    %233 = vmatprep.subr.mxu0 0.0
    %234 = vmatpush2.msra.mxu0 0.0
    %235 = vmatprep.subr.mxu0 0.0
    %236 = vmatpush2.msra.mxu0 0.0
    %237 = vmatprep.subr.mxu0 0.0
    %238 = vmatpush2.msra.mxu0 0.0
    %239 = vmatprep.subr.mxu0 0.0
    %240 = vmatpush2.msra.mxu0 0.0
    %241 = vmatprep.subr.mxu0 0.0
    %242 = vmatpush2.msra.mxu0 0.0
    %243 = vmatprep.subr.mxu0 0.0
    %244 = vmatpush2.msra.mxu0 0.0
    %245 = vmatprep.subr.mxu0 0.0
    %246 = vmatpush2.msra.mxu0 0.0
    %247 = vmatprep.subr.mxu0 0.0
    %248 = vmatpush2.msra.mxu0 0.0
    %249 = vmatprep.subr.mxu0 0.0
    %250 = vmatpush2.msra.mxu0 0.0
    %251 = vmatprep.subr.mxu0 0.0
    %252 = vmatpush2.msra.mxu0 0.0
    %253 = vmatprep.subr.mxu0 0.0
    %254 = vmatpush2.msra.mxu0 0.0
    %255 = vmatprep.subr.mxu0 0.0
    %256 = vmatpush2.msra.mxu0 0.0
    %257 = vmatprep.subr.mxu0 0.0
    %258 = vmatpush2.msra.mxu0 0.0
    %259 = vmatprep.subr.mxu0 0.0
    %260 = vmatpush2.msra.mxu0 0.0
    %261 = vmatprep.mubr.f32.mxu0 0.0
    %262 = vmatmul.mubr.f32.gmra.mxu0 %v195
    %v263 = vpop.f32.mrf.mxu0
    %v264 = vadd.f32 0.0, %v263
    %v265 = vpop.f32.mrf.mxu0
    %266 = vdwg.mxu0
    %v267 = vadd.f32 %v192, %v264
    %v268 = vtanh.pop %v267
    %v269 = vxor.u32 %v267, 2147483648
    %v270 = vmul.f32 %v269, 1.442695
    %v271 = vpow.pop %v270
    %v272 = vadd.f32 %v271, 1.0
    %v273 = vrcp.pop %v272
    %v274 = vmul.f32 1.0, %v273
    %v275 = vsel %vm191, %v268, %v274
    %v276 = vmul.f32 %v275, 0.0
    %278 = vrot.lane.b32.xlu0 %v275, 64
    %v279 = vpop.permute.xlu0 %278
    %v281 = vmul.f32 %v275, %v279
    %283 = vrot.lane.b32.xlu0 %v281, 32
    %v284 = vpop.permute.xlu0 %283
    %v286 = vadd.f32 %v276, %v284
    %v287 = vtanh.pop %v286
    %289 = vrot.lane.b32.xlu0 %v287, 64
    %v290 = vpop.permute.xlu0 %289
    %v292 = vmul.f32 %v275, %v290
    %294 = vrot.lane.b32.xlu0 %v292, 32
    %v295 = vpop.permute.xlu0 %294
    %297 = vst.msk [vmem:[#allocation3] sm:$0xff] %vm193, %v295
    %s298 = scalar_lea.vmem [#allocation2], 8
    %v299 = vld [vmem:[%s298] sm:$0xff]
    %v300 = vsel %vm193, %v295, 0
    %302 = vmatprep.subr.mxu0 0.0
    %303 = vmatpush1.msra.mxu0 0.0
    %304 = vmatprep.subr.mxu0 0.0
    %305 = vmatpush1.msra.mxu0 0.0
    %306 = vmatprep.subr.mxu0 0.0
    %307 = vmatpush1.msra.mxu0 0.0
    %308 = vmatprep.subr.mxu0 0.0
    %309 = vmatpush1.msra.mxu0 0.0
    %310 = vmatprep.subr.mxu0 0.0
    %311 = vmatpush1.msra.mxu0 0.0
    %312 = vmatprep.subr.mxu0 0.0
    %313 = vmatpush1.msra.mxu0 0.0
    %314 = vmatprep.subr.mxu0 0.0
    %315 = vmatpush1.msra.mxu0 0.0
    %316 = vmatprep.subr.mxu0 0.0
    %317 = vmatpush1.msra.mxu0 0.0
    %318 = vmatprep.subr.mxu0 0.0
    %319 = vmatpush1.msra.mxu0 0.0
    %320 = vmatprep.subr.mxu0 0.0
    %321 = vmatpush1.msra.mxu0 0.0
    %322 = vmatprep.subr.mxu0 0.0
    %323 = vmatpush1.msra.mxu0 0.0
    %324 = vmatprep.subr.mxu0 0.0
    %325 = vmatpush1.msra.mxu0 0.0
    %326 = vmatprep.subr.mxu0 0.0
    %327 = vmatpush1.msra.mxu0 %v186
    %328 = vmatprep.subr.mxu0 0.0
    %329 = vmatpush1.msra.mxu0 %v185
    %330 = vmatprep.subr.mxu0 0.0
    %331 = vmatpush1.msra.mxu0 %v184
    %332 = vmatprep.subr.mxu0 0.0
    %333 = vmatpush1.msra.mxu0 %v183
    %334 = vmatprep.subr.mxu0 0.0
    %335 = vmatpush2.msra.mxu0 0.0
    %336 = vmatprep.subr.mxu0 0.0
    %337 = vmatpush2.msra.mxu0 0.0
    %338 = vmatprep.subr.mxu0 0.0
    %339 = vmatpush2.msra.mxu0 0.0
    %340 = vmatprep.subr.mxu0 0.0
    %341 = vmatpush2.msra.mxu0 0.0
    %342 = vmatprep.subr.mxu0 0.0
    %343 = vmatpush2.msra.mxu0 0.0
    %344 = vmatprep.subr.mxu0 0.0
    %345 = vmatpush2.msra.mxu0 0.0
    %346 = vmatprep.subr.mxu0 0.0
    %347 = vmatpush2.msra.mxu0 0.0
    %348 = vmatprep.subr.mxu0 0.0
    %349 = vmatpush2.msra.mxu0 0.0
    %350 = vmatprep.subr.mxu0 0.0
    %351 = vmatpush2.msra.mxu0 0.0
    %352 = vmatprep.subr.mxu0 0.0
    %353 = vmatpush2.msra.mxu0 0.0
    %354 = vmatprep.subr.mxu0 0.0
    %355 = vmatpush2.msra.mxu0 0.0
    %356 = vmatprep.subr.mxu0 0.0
    %357 = vmatpush2.msra.mxu0 0.0
    %358 = vmatprep.subr.mxu0 0.0
    %359 = vmatpush2.msra.mxu0 0.0
    %360 = vmatprep.subr.mxu0 0.0
    %361 = vmatpush2.msra.mxu0 0.0
    %362 = vmatprep.subr.mxu0 0.0
    %363 = vmatpush2.msra.mxu0 0.0
    %364 = vmatprep.subr.mxu0 0.0
    %365 = vmatpush2.msra.mxu0 0.0
    %366 = vmatprep.mubr.f32.mxu0 0.0
    %367 = vmatmul.mubr.f32.gmra.mxu0 %v300
    %v368 = vpop.f32.mrf.mxu0
    %v369 = vadd.f32 0.0, %v368
    %v370 = vpop.f32.mrf.mxu0
    %371 = vdwg.mxu0
    %v372 = vadd.f32 %v299, %v369
    %v373 = vtanh.pop %v372
    %v374 = vxor.u32 %v372, 2147483648
    %v375 = vmul.f32 %v374, 1.442695
    %v376 = vpow.pop %v375
    %v377 = vadd.f32 %v376, 1.0
    %v378 = vrcp.pop %v377
    %v379 = vmul.f32 1.0, %v378
    %v380 = vsel %vm191, %v373, %v379
    %v381 = vmul.f32 %v380, %v286
    %383 = vrot.lane.b32.xlu0 %v380, 64
    %v384 = vpop.permute.xlu0 %383
    %v386 = vmul.f32 %v380, %v384
    %388 = vrot.lane.b32.xlu0 %v386, 32
    %v389 = vpop.permute.xlu0 %388
    %v391 = vadd.f32 %v381, %v389
    %v392 = vtanh.pop %v391
    %394 = vrot.lane.b32.xlu0 %v392, 64
    %v395 = vpop.permute.xlu0 %394
    %v397 = vmul.f32 %v380, %v395
    %399 = vrot.lane.b32.xlu0 %v397, 32
    %v400 = vpop.permute.xlu0 %399
    %s402 = scalar_lea.vmem [#allocation3], 8
    %403 = vst.msk [vmem:[%s402] sm:$0xff] %vm193, %v400
    %s404 = scalar_lea.vmem [#allocation2], 16
    %v405 = vld [vmem:[%s404] sm:$0xff]
    %v406 = vsel %vm193, %v400, 0
    %408 = vmatprep.subr.mxu0 0.0
    %409 = vmatpush1.msra.mxu0 0.0
    %410 = vmatprep.subr.mxu0 0.0
    %411 = vmatpush1.msra.mxu0 0.0
    %412 = vmatprep.subr.mxu0 0.0
    %413 = vmatpush1.msra.mxu0 0.0
    %414 = vmatprep.subr.mxu0 0.0
    %415 = vmatpush1.msra.mxu0 0.0
    %416 = vmatprep.subr.mxu0 0.0
    %417 = vmatpush1.msra.mxu0 0.0
    %418 = vmatprep.subr.mxu0 0.0
    %419 = vmatpush1.msra.mxu0 0.0
    %420 = vmatprep.subr.mxu0 0.0
    %421 = vmatpush1.msra.mxu0 0.0
    %422 = vmatprep.subr.mxu0 0.0
    %423 = vmatpush1.msra.mxu0 0.0
    %424 = vmatprep.subr.mxu0 0.0
    %425 = vmatpush1.msra.mxu0 0.0
    %426 = vmatprep.subr.mxu0 0.0
    %427 = vmatpush1.msra.mxu0 0.0
    %428 = vmatprep.subr.mxu0 0.0
    %429 = vmatpush1.msra.mxu0 0.0
    %430 = vmatprep.subr.mxu0 0.0
    %431 = vmatpush1.msra.mxu0 0.0
    %432 = vmatprep.subr.mxu0 0.0
    %433 = vmatpush1.msra.mxu0 %v186
    %434 = vmatprep.subr.mxu0 0.0
    %435 = vmatpush1.msra.mxu0 %v185
    %436 = vmatprep.subr.mxu0 0.0
    %437 = vmatpush1.msra.mxu0 %v184
    %438 = vmatprep.subr.mxu0 0.0
    %439 = vmatpush1.msra.mxu0 %v183
    %440 = vmatprep.subr.mxu0 0.0
    %441 = vmatpush2.msra.mxu0 0.0
    %442 = vmatprep.subr.mxu0 0.0
    %443 = vmatpush2.msra.mxu0 0.0
    %444 = vmatprep.subr.mxu0 0.0
    %445 = vmatpush2.msra.mxu0 0.0
    %446 = vmatprep.subr.mxu0 0.0
    %447 = vmatpush2.msra.mxu0 0.0
    %448 = vmatprep.subr.mxu0 0.0
    %449 = vmatpush2.msra.mxu0 0.0
    %450 = vmatprep.subr.mxu0 0.0
    %451 = vmatpush2.msra.mxu0 0.0
    %452 = vmatprep.subr.mxu0 0.0
    %453 = vmatpush2.msra.mxu0 0.0
    %454 = vmatprep.subr.mxu0 0.0
    %455 = vmatpush2.msra.mxu0 0.0
    %456 = vmatprep.subr.mxu0 0.0
    %457 = vmatpush2.msra.mxu0 0.0
    %458 = vmatprep.subr.mxu0 0.0
    %459 = vmatpush2.msra.mxu0 0.0
    %460 = vmatprep.subr.mxu0 0.0
    %461 = vmatpush2.msra.mxu0 0.0
    %462 = vmatprep.subr.mxu0 0.0
    %463 = vmatpush2.msra.mxu0 0.0
    %464 = vmatprep.subr.mxu0 0.0
    %465 = vmatpush2.msra.mxu0 0.0
    %466 = vmatprep.subr.mxu0 0.0
    %467 = vmatpush2.msra.mxu0 0.0
    %468 = vmatprep.subr.mxu0 0.0
    %469 = vmatpush2.msra.mxu0 0.0
    %470 = vmatprep.subr.mxu0 0.0
    %471 = vmatpush2.msra.mxu0 0.0
    %472 = vmatprep.mubr.f32.mxu0 0.0
    %473 = vmatmul.mubr.f32.gmra.mxu0 %v406
    %v474 = vpop.f32.mrf.mxu0
    %v475 = vadd.f32 0.0, %v474
    %v476 = vpop.f32.mrf.mxu0
    %477 = vdwg.mxu0
    %v478 = vadd.f32 %v405, %v475
    %v479 = vtanh.pop %v478
    %v480 = vxor.u32 %v478, 2147483648
    %v481 = vmul.f32 %v480, 1.442695
    %v482 = vpow.pop %v481
    %v483 = vadd.f32 %v482, 1.0
    %v484 = vrcp.pop %v483
    %v485 = vmul.f32 1.0, %v484
    %v486 = vsel %vm191, %v479, %v485
    %v487 = vmul.f32 %v486, %v391
    %489 = vrot.lane.b32.xlu0 %v486, 64
    %v490 = vpop.permute.xlu0 %489
    %v492 = vmul.f32 %v486, %v490
    %494 = vrot.lane.b32.xlu0 %v492, 32
    %v495 = vpop.permute.xlu0 %494
    %v497 = vadd.f32 %v487, %v495
    %v498 = vtanh.pop %v497
    %500 = vrot.lane.b32.xlu0 %v498, 64
    %v501 = vpop.permute.xlu0 %500
    %v503 = vmul.f32 %v486, %v501
    %505 = vrot.lane.b32.xlu0 %v503, 32
    %v506 = vpop.permute.xlu0 %505
    %s508 = scalar_lea.vmem [#allocation3], 16
    %509 = vst.msk [vmem:[%s508] sm:$0xff] %vm193, %v506
    %s510 = scalar_lea.vmem [#allocation2], 24
    %v511 = vld [vmem:[%s510] sm:$0xff]
    %v512 = vsel %vm193, %v506, 0
    %514 = vmatprep.subr.mxu0 0.0
    %515 = vmatpush1.msra.mxu0 0.0
    %516 = vmatprep.subr.mxu0 0.0
    %517 = vmatpush1.msra.mxu0 0.0
    %518 = vmatprep.subr.mxu0 0.0
    %519 = vmatpush1.msra.mxu0 0.0
    %520 = vmatprep.subr.mxu0 0.0
    %521 = vmatpush1.msra.mxu0 0.0
    %522 = vmatprep.subr.mxu0 0.0
    %523 = vmatpush1.msra.mxu0 0.0
    %524 = vmatprep.subr.mxu0 0.0
    %525 = vmatpush1.msra.mxu0 0.0
    %526 = vmatprep.subr.mxu0 0.0
    %527 = vmatpush1.msra.mxu0 0.0
    %528 = vmatprep.subr.mxu0 0.0
    %529 = vmatpush1.msra.mxu0 0.0
    %530 = vmatprep.subr.mxu0 0.0
    %531 = vmatpush1.msra.mxu0 0.0
    %532 = vmatprep.subr.mxu0 0.0
    %533 = vmatpush1.msra.mxu0 0.0
    %534 = vmatprep.subr.mxu0 0.0
    %535 = vmatpush1.msra.mxu0 0.0
    %536 = vmatprep.subr.mxu0 0.0
    %537 = vmatpush1.msra.mxu0 0.0
    %538 = vmatprep.subr.mxu0 0.0
    %539 = vmatpush1.msra.mxu0 %v186
    %540 = vmatprep.subr.mxu0 0.0
    %541 = vmatpush1.msra.mxu0 %v185
    %542 = vmatprep.subr.mxu0 0.0
    %543 = vmatpush1.msra.mxu0 %v184
    %544 = vmatprep.subr.mxu0 0.0
    %545 = vmatpush1.msra.mxu0 %v183
    %546 = vmatprep.subr.mxu0 0.0
    %547 = vmatpush2.msra.mxu0 0.0
    %548 = vmatprep.subr.mxu0 0.0
    %549 = vmatpush2.msra.mxu0 0.0
    %550 = vmatprep.subr.mxu0 0.0
    %551 = vmatpush2.msra.mxu0 0.0
    %552 = vmatprep.subr.mxu0 0.0
    %553 = vmatpush2.msra.mxu0 0.0
    %554 = vmatprep.subr.mxu0 0.0
    %555 = vmatpush2.msra.mxu0 0.0
    %556 = vmatprep.subr.mxu0 0.0
    %557 = vmatpush2.msra.mxu0 0.0
    %558 = vmatprep.subr.mxu0 0.0
    %559 = vmatpush2.msra.mxu0 0.0
    %560 = vmatprep.subr.mxu0 0.0
    %561 = vmatpush2.msra.mxu0 0.0
    %562 = vmatprep.subr.mxu0 0.0
    %563 = vmatpush2.msra.mxu0 0.0
    %564 = vmatprep.subr.mxu0 0.0
    %565 = vmatpush2.msra.mxu0 0.0
    %566 = vmatprep.subr.mxu0 0.0
    %567 = vmatpush2.msra.mxu0 0.0
    %568 = vmatprep.subr.mxu0 0.0
    %569 = vmatpush2.msra.mxu0 0.0
    %570 = vmatprep.subr.mxu0 0.0
    %571 = vmatpush2.msra.mxu0 0.0
    %572 = vmatprep.subr.mxu0 0.0
    %573 = vmatpush2.msra.mxu0 0.0
    %574 = vmatprep.subr.mxu0 0.0
    %575 = vmatpush2.msra.mxu0 0.0
    %576 = vmatprep.subr.mxu0 0.0
    %577 = vmatpush2.msra.mxu0 0.0
    %578 = vmatprep.mubr.f32.mxu0 0.0
    %579 = vmatmul.mubr.f32.gmra.mxu0 %v512
    %v580 = vpop.f32.mrf.mxu0
    %v581 = vadd.f32 0.0, %v580
    %v582 = vpop.f32.mrf.mxu0
    %583 = vdwg.mxu0
    %v584 = vadd.f32 %v511, %v581
    %v585 = vtanh.pop %v584
    %v586 = vxor.u32 %v584, 2147483648
    %v587 = vmul.f32 %v586, 1.442695
    %v588 = vpow.pop %v587
    %v589 = vadd.f32 %v588, 1.0
    %v590 = vrcp.pop %v589
    %v591 = vmul.f32 1.0, %v590
    %v592 = vsel %vm191, %v585, %v591
    %v593 = vmul.f32 %v592, %v497
    %595 = vrot.lane.b32.xlu0 %v592, 64
    %v596 = vpop.permute.xlu0 %595
    %v598 = vmul.f32 %v592, %v596
    %600 = vrot.lane.b32.xlu0 %v598, 32
    %v601 = vpop.permute.xlu0 %600
    %v603 = vadd.f32 %v593, %v601
    %v604 = vtanh.pop %v603
    %606 = vrot.lane.b32.xlu0 %v604, 64
    %v607 = vpop.permute.xlu0 %606
    %v609 = vmul.f32 %v592, %v607
    %611 = vrot.lane.b32.xlu0 %v609, 32
    %v612 = vpop.permute.xlu0 %611
    %s614 = scalar_lea.vmem [#allocation3], 24
    %615 = vst.msk [vmem:[%s614] sm:$0xff] %vm193, %v612
    %s616 = scalar_lea.vmem [#allocation2], 32
    %v617 = vld [vmem:[%s616] sm:$0xff]
    %v618 = vsel %vm193, %v612, 0
    %620 = vmatprep.subr.mxu0 0.0
    %621 = vmatpush1.msra.mxu0 0.0
    %622 = vmatprep.subr.mxu0 0.0
    %623 = vmatpush1.msra.mxu0 0.0
    %624 = vmatprep.subr.mxu0 0.0
    %625 = vmatpush1.msra.mxu0 0.0
    %626 = vmatprep.subr.mxu0 0.0
    %627 = vmatpush1.msra.mxu0 0.0
    %628 = vmatprep.subr.mxu0 0.0
    %629 = vmatpush1.msra.mxu0 0.0
    %630 = vmatprep.subr.mxu0 0.0
    %631 = vmatpush1.msra.mxu0 0.0
    %632 = vmatprep.subr.mxu0 0.0
    %633 = vmatpush1.msra.mxu0 0.0
    %634 = vmatprep.subr.mxu0 0.0
    %635 = vmatpush1.msra.mxu0 0.0
    %636 = vmatprep.subr.mxu0 0.0
    %637 = vmatpush1.msra.mxu0 0.0
    %638 = vmatprep.subr.mxu0 0.0
    %639 = vmatpush1.msra.mxu0 0.0
    %640 = vmatprep.subr.mxu0 0.0
    %641 = vmatpush1.msra.mxu0 0.0
    %642 = vmatprep.subr.mxu0 0.0
    %643 = vmatpush1.msra.mxu0 0.0
    %644 = vmatprep.subr.mxu0 0.0
    %645 = vmatpush1.msra.mxu0 %v186
    %646 = vmatprep.subr.mxu0 0.0
    %647 = vmatpush1.msra.mxu0 %v185
    %648 = vmatprep.subr.mxu0 0.0
    %649 = vmatpush1.msra.mxu0 %v184
    %650 = vmatprep.subr.mxu0 0.0
    %651 = vmatpush1.msra.mxu0 %v183
    %652 = vmatprep.subr.mxu0 0.0
    %653 = vmatpush2.msra.mxu0 0.0
    %654 = vmatprep.subr.mxu0 0.0
    %655 = vmatpush2.msra.mxu0 0.0
    %656 = vmatprep.subr.mxu0 0.0
    %657 = vmatpush2.msra.mxu0 0.0
    %658 = vmatprep.subr.mxu0 0.0
    %659 = vmatpush2.msra.mxu0 0.0
    %660 = vmatprep.subr.mxu0 0.0
    %661 = vmatpush2.msra.mxu0 0.0
    %662 = vmatprep.subr.mxu0 0.0
    %663 = vmatpush2.msra.mxu0 0.0
    %664 = vmatprep.subr.mxu0 0.0
    %665 = vmatpush2.msra.mxu0 0.0
    %666 = vmatprep.subr.mxu0 0.0
    %667 = vmatpush2.msra.mxu0 0.0
    %668 = vmatprep.subr.mxu0 0.0
    %669 = vmatpush2.msra.mxu0 0.0
    %670 = vmatprep.subr.mxu0 0.0
    %671 = vmatpush2.msra.mxu0 0.0
    %672 = vmatprep.subr.mxu0 0.0
    %673 = vmatpush2.msra.mxu0 0.0
    %674 = vmatprep.subr.mxu0 0.0
    %675 = vmatpush2.msra.mxu0 0.0
    %676 = vmatprep.subr.mxu0 0.0
    %677 = vmatpush2.msra.mxu0 0.0
    %678 = vmatprep.subr.mxu0 0.0
    %679 = vmatpush2.msra.mxu0 0.0
    %680 = vmatprep.subr.mxu0 0.0
    %681 = vmatpush2.msra.mxu0 0.0
    %682 = vmatprep.subr.mxu0 0.0
    %683 = vmatpush2.msra.mxu0 0.0
    %684 = vmatprep.mubr.f32.mxu0 0.0
    %685 = vmatmul.mubr.f32.gmra.mxu0 %v618
    %v686 = vpop.f32.mrf.mxu0
    %v687 = vadd.f32 0.0, %v686
    %v688 = vpop.f32.mrf.mxu0
    %689 = vdwg.mxu0
    %v690 = vadd.f32 %v617, %v687
    %v691 = vtanh.pop %v690
    %v692 = vxor.u32 %v690, 2147483648
    %v693 = vmul.f32 %v692, 1.442695
    %v694 = vpow.pop %v693
    %v695 = vadd.f32 %v694, 1.0
    %v696 = vrcp.pop %v695
    %v697 = vmul.f32 1.0, %v696
    %v698 = vsel %vm191, %v691, %v697
    %v699 = vmul.f32 %v698, %v603
    %701 = vrot.lane.b32.xlu0 %v698, 64
    %v702 = vpop.permute.xlu0 %701
    %v704 = vmul.f32 %v698, %v702
    %706 = vrot.lane.b32.xlu0 %v704, 32
    %v707 = vpop.permute.xlu0 %706
    %v709 = vadd.f32 %v699, %v707
    %v710 = vtanh.pop %v709
    %712 = vrot.lane.b32.xlu0 %v710, 64
    %v713 = vpop.permute.xlu0 %712
    %v715 = vmul.f32 %v698, %v713
    %717 = vrot.lane.b32.xlu0 %v715, 32
    %v718 = vpop.permute.xlu0 %717
    %s720 = scalar_lea.vmem [#allocation3], 32
    %721 = vst.msk [vmem:[%s720] sm:$0xff] %vm193, %v718
    %s722 = scalar_lea.vmem [#allocation2], 40
    %v723 = vld [vmem:[%s722] sm:$0xff]
    %v724 = vsel %vm193, %v718, 0
    %726 = vmatprep.subr.mxu0 0.0
    %727 = vmatpush1.msra.mxu0 0.0
    %728 = vmatprep.subr.mxu0 0.0
    %729 = vmatpush1.msra.mxu0 0.0
    %730 = vmatprep.subr.mxu0 0.0
    %731 = vmatpush1.msra.mxu0 0.0
    %732 = vmatprep.subr.mxu0 0.0
    %733 = vmatpush1.msra.mxu0 0.0
    %734 = vmatprep.subr.mxu0 0.0
    %735 = vmatpush1.msra.mxu0 0.0
    %736 = vmatprep.subr.mxu0 0.0
    %737 = vmatpush1.msra.mxu0 0.0
    %738 = vmatprep.subr.mxu0 0.0
    %739 = vmatpush1.msra.mxu0 0.0
    %740 = vmatprep.subr.mxu0 0.0
    %741 = vmatpush1.msra.mxu0 0.0
    %742 = vmatprep.subr.mxu0 0.0
    %743 = vmatpush1.msra.mxu0 0.0
    %744 = vmatprep.subr.mxu0 0.0
    %745 = vmatpush1.msra.mxu0 0.0
    %746 = vmatprep.subr.mxu0 0.0
    %747 = vmatpush1.msra.mxu0 0.0
    %748 = vmatprep.subr.mxu0 0.0
    %749 = vmatpush1.msra.mxu0 0.0
    %750 = vmatprep.subr.mxu0 0.0
    %751 = vmatpush1.msra.mxu0 %v186
    %752 = vmatprep.subr.mxu0 0.0
    %753 = vmatpush1.msra.mxu0 %v185
    %754 = vmatprep.subr.mxu0 0.0
    %755 = vmatpush1.msra.mxu0 %v184
    %756 = vmatprep.subr.mxu0 0.0
    %757 = vmatpush1.msra.mxu0 %v183
    %758 = vmatprep.subr.mxu0 0.0
    %759 = vmatpush2.msra.mxu0 0.0
    %760 = vmatprep.subr.mxu0 0.0
    %761 = vmatpush2.msra.mxu0 0.0
    %762 = vmatprep.subr.mxu0 0.0
    %763 = vmatpush2.msra.mxu0 0.0
    %764 = vmatprep.subr.mxu0 0.0
    %765 = vmatpush2.msra.mxu0 0.0
    %766 = vmatprep.subr.mxu0 0.0
    %767 = vmatpush2.msra.mxu0 0.0
    %768 = vmatprep.subr.mxu0 0.0
    %769 = vmatpush2.msra.mxu0 0.0
    %770 = vmatprep.subr.mxu0 0.0
    %771 = vmatpush2.msra.mxu0 0.0
    %772 = vmatprep.subr.mxu0 0.0
    %773 = vmatpush2.msra.mxu0 0.0
    %774 = vmatprep.subr.mxu0 0.0
    %775 = vmatpush2.msra.mxu0 0.0
    %776 = vmatprep.subr.mxu0 0.0
    %777 = vmatpush2.msra.mxu0 0.0
    %778 = vmatprep.subr.mxu0 0.0
    %779 = vmatpush2.msra.mxu0 0.0
    %780 = vmatprep.subr.mxu0 0.0
    %781 = vmatpush2.msra.mxu0 0.0
    %782 = vmatprep.subr.mxu0 0.0
    %783 = vmatpush2.msra.mxu0 0.0
    %784 = vmatprep.subr.mxu0 0.0
    %785 = vmatpush2.msra.mxu0 0.0
    %786 = vmatprep.subr.mxu0 0.0
    %787 = vmatpush2.msra.mxu0 0.0
    %788 = vmatprep.subr.mxu0 0.0
    %789 = vmatpush2.msra.mxu0 0.0
    %790 = vmatprep.mubr.f32.mxu0 0.0
    %791 = vmatmul.mubr.f32.gmra.mxu0 %v724
    %v792 = vpop.f32.mrf.mxu0
    %v793 = vadd.f32 0.0, %v792
    %v794 = vpop.f32.mrf.mxu0
    %795 = vdwg.mxu0
    %v796 = vadd.f32 %v723, %v793
    %v797 = vtanh.pop %v796
    %v798 = vxor.u32 %v796, 2147483648
    %v799 = vmul.f32 %v798, 1.442695
    %v800 = vpow.pop %v799
    %v801 = vadd.f32 %v800, 1.0
    %v802 = vrcp.pop %v801
    %v803 = vmul.f32 1.0, %v802
    %v804 = vsel %vm191, %v797, %v803
    %v805 = vmul.f32 %v804, %v709
    %807 = vrot.lane.b32.xlu0 %v804, 64
    %v808 = vpop.permute.xlu0 %807
    %v810 = vmul.f32 %v804, %v808
    %812 = vrot.lane.b32.xlu0 %v810, 32
    %v813 = vpop.permute.xlu0 %812
    %v815 = vadd.f32 %v805, %v813
    %v816 = vtanh.pop %v815
    %818 = vrot.lane.b32.xlu0 %v816, 64
    %v819 = vpop.permute.xlu0 %818
    %v821 = vmul.f32 %v804, %v819
    %823 = vrot.lane.b32.xlu0 %v821, 32
    %v824 = vpop.permute.xlu0 %823
    %s826 = scalar_lea.vmem [#allocation3], 40
    %827 = vst.msk [vmem:[%s826] sm:$0xff] %vm193, %v824
    %s828 = scalar_lea.vmem [#allocation2], 48
    %v829 = vld [vmem:[%s828] sm:$0xff]
    %v830 = vsel %vm193, %v824, 0
    %832 = vmatprep.subr.mxu0 0.0
    %833 = vmatpush1.msra.mxu0 0.0
    %834 = vmatprep.subr.mxu0 0.0
    %835 = vmatpush1.msra.mxu0 0.0
    %836 = vmatprep.subr.mxu0 0.0
    %837 = vmatpush1.msra.mxu0 0.0
    %838 = vmatprep.subr.mxu0 0.0
    %839 = vmatpush1.msra.mxu0 0.0
    %840 = vmatprep.subr.mxu0 0.0
    %841 = vmatpush1.msra.mxu0 0.0
    %842 = vmatprep.subr.mxu0 0.0
    %843 = vmatpush1.msra.mxu0 0.0
    %844 = vmatprep.subr.mxu0 0.0
    %845 = vmatpush1.msra.mxu0 0.0
    %846 = vmatprep.subr.mxu0 0.0
    %847 = vmatpush1.msra.mxu0 0.0
    %848 = vmatprep.subr.mxu0 0.0
    %849 = vmatpush1.msra.mxu0 0.0
    %850 = vmatprep.subr.mxu0 0.0
    %851 = vmatpush1.msra.mxu0 0.0
    %852 = vmatprep.subr.mxu0 0.0
    %853 = vmatpush1.msra.mxu0 0.0
    %854 = vmatprep.subr.mxu0 0.0
    %855 = vmatpush1.msra.mxu0 0.0
    %856 = vmatprep.subr.mxu0 0.0
    %857 = vmatpush1.msra.mxu0 %v186
    %858 = vmatprep.subr.mxu0 0.0
    %859 = vmatpush1.msra.mxu0 %v185
    %860 = vmatprep.subr.mxu0 0.0
    %861 = vmatpush1.msra.mxu0 %v184
    %862 = vmatprep.subr.mxu0 0.0
    %863 = vmatpush1.msra.mxu0 %v183
    %864 = vmatprep.subr.mxu0 0.0
    %865 = vmatpush2.msra.mxu0 0.0
    %866 = vmatprep.subr.mxu0 0.0
    %867 = vmatpush2.msra.mxu0 0.0
    %868 = vmatprep.subr.mxu0 0.0
    %869 = vmatpush2.msra.mxu0 0.0
    %870 = vmatprep.subr.mxu0 0.0
    %871 = vmatpush2.msra.mxu0 0.0
    %872 = vmatprep.subr.mxu0 0.0
    %873 = vmatpush2.msra.mxu0 0.0
    %874 = vmatprep.subr.mxu0 0.0
    %875 = vmatpush2.msra.mxu0 0.0
    %876 = vmatprep.subr.mxu0 0.0
    %877 = vmatpush2.msra.mxu0 0.0
    %878 = vmatprep.subr.mxu0 0.0
    %879 = vmatpush2.msra.mxu0 0.0
    %880 = vmatprep.subr.mxu0 0.0
    %881 = vmatpush2.msra.mxu0 0.0
    %882 = vmatprep.subr.mxu0 0.0
    %883 = vmatpush2.msra.mxu0 0.0
    %884 = vmatprep.subr.mxu0 0.0
    %885 = vmatpush2.msra.mxu0 0.0
    %886 = vmatprep.subr.mxu0 0.0
    %887 = vmatpush2.msra.mxu0 0.0
    %888 = vmatprep.subr.mxu0 0.0
    %889 = vmatpush2.msra.mxu0 0.0
    %890 = vmatprep.subr.mxu0 0.0
    %891 = vmatpush2.msra.mxu0 0.0
    %892 = vmatprep.subr.mxu0 0.0
    %893 = vmatpush2.msra.mxu0 0.0
    %894 = vmatprep.subr.mxu0 0.0
    %895 = vmatpush2.msra.mxu0 0.0
    %896 = vmatprep.mubr.f32.mxu0 0.0
    %897 = vmatmul.mubr.f32.gmra.mxu0 %v830
    %v898 = vpop.f32.mrf.mxu0
    %v899 = vadd.f32 0.0, %v898
    %v900 = vpop.f32.mrf.mxu0
    %901 = vdwg.mxu0
    %v902 = vadd.f32 %v829, %v899
    %v903 = vtanh.pop %v902
    %v904 = vxor.u32 %v902, 2147483648
    %v905 = vmul.f32 %v904, 1.442695
    %v906 = vpow.pop %v905
    %v907 = vadd.f32 %v906, 1.0
    %v908 = vrcp.pop %v907
    %v909 = vmul.f32 1.0, %v908
    %v910 = vsel %vm191, %v903, %v909
    %v911 = vmul.f32 %v910, %v815
    %913 = vrot.lane.b32.xlu0 %v910, 64
    %v914 = vpop.permute.xlu0 %913
    %v916 = vmul.f32 %v910, %v914
    %918 = vrot.lane.b32.xlu0 %v916, 32
    %v919 = vpop.permute.xlu0 %918
    %v921 = vadd.f32 %v911, %v919
    %v922 = vtanh.pop %v921
    %924 = vrot.lane.b32.xlu0 %v922, 64
    %v925 = vpop.permute.xlu0 %924
    %v927 = vmul.f32 %v910, %v925
    %929 = vrot.lane.b32.xlu0 %v927, 32
    %v930 = vpop.permute.xlu0 %929
    %s932 = scalar_lea.vmem [#allocation3], 48
    %933 = vst.msk [vmem:[%s932] sm:$0xff] %vm193, %v930
    %s934 = scalar_lea.vmem [#allocation2], 56
    %v935 = vld [vmem:[%s934] sm:$0xff]
    %v936 = vsel %vm193, %v930, 0
    %938 = vmatprep.subr.mxu0 0.0
    %939 = vmatpush1.msra.mxu0 0.0
    %940 = vmatprep.subr.mxu0 0.0
    %941 = vmatpush1.msra.mxu0 0.0
    %942 = vmatprep.subr.mxu0 0.0
    %943 = vmatpush1.msra.mxu0 0.0
    %944 = vmatprep.subr.mxu0 0.0
    %945 = vmatpush1.msra.mxu0 0.0
    %946 = vmatprep.subr.mxu0 0.0
    %947 = vmatpush1.msra.mxu0 0.0
    %948 = vmatprep.subr.mxu0 0.0
    %949 = vmatpush1.msra.mxu0 0.0
    %950 = vmatprep.subr.mxu0 0.0
    %951 = vmatpush1.msra.mxu0 0.0
    %952 = vmatprep.subr.mxu0 0.0
    %953 = vmatpush1.msra.mxu0 0.0
    %954 = vmatprep.subr.mxu0 0.0
    %955 = vmatpush1.msra.mxu0 0.0
    %956 = vmatprep.subr.mxu0 0.0
    %957 = vmatpush1.msra.mxu0 0.0
    %958 = vmatprep.subr.mxu0 0.0
    %959 = vmatpush1.msra.mxu0 0.0
    %960 = vmatprep.subr.mxu0 0.0
    %961 = vmatpush1.msra.mxu0 0.0
    %962 = vmatprep.subr.mxu0 0.0
    %963 = vmatpush1.msra.mxu0 %v186
    %964 = vmatprep.subr.mxu0 0.0
    %965 = vmatpush1.msra.mxu0 %v185
    %966 = vmatprep.subr.mxu0 0.0
    %967 = vmatpush1.msra.mxu0 %v184
    %968 = vmatprep.subr.mxu0 0.0
    %969 = vmatpush1.msra.mxu0 %v183
    %970 = vmatprep.subr.mxu0 0.0
    %971 = vmatpush2.msra.mxu0 0.0
    %972 = vmatprep.subr.mxu0 0.0
    %973 = vmatpush2.msra.mxu0 0.0
    %974 = vmatprep.subr.mxu0 0.0
    %975 = vmatpush2.msra.mxu0 0.0
    %976 = vmatprep.subr.mxu0 0.0
    %977 = vmatpush2.msra.mxu0 0.0
    %978 = vmatprep.subr.mxu0 0.0
    %979 = vmatpush2.msra.mxu0 0.0
    %980 = vmatprep.subr.mxu0 0.0
    %981 = vmatpush2.msra.mxu0 0.0
    %982 = vmatprep.subr.mxu0 0.0
    %983 = vmatpush2.msra.mxu0 0.0
    %984 = vmatprep.subr.mxu0 0.0
    %985 = vmatpush2.msra.mxu0 0.0
    %986 = vmatprep.subr.mxu0 0.0
    %987 = vmatpush2.msra.mxu0 0.0
    %988 = vmatprep.subr.mxu0 0.0
    %989 = vmatpush2.msra.mxu0 0.0
    %990 = vmatprep.subr.mxu0 0.0
    %991 = vmatpush2.msra.mxu0 0.0
    %992 = vmatprep.subr.mxu0 0.0
    %993 = vmatpush2.msra.mxu0 0.0
    %994 = vmatprep.subr.mxu0 0.0
    %995 = vmatpush2.msra.mxu0 0.0
    %996 = vmatprep.subr.mxu0 0.0
    %997 = vmatpush2.msra.mxu0 0.0
    %998 = vmatprep.subr.mxu0 0.0
    %999 = vmatpush2.msra.mxu0 0.0
    %1000 = vmatprep.subr.mxu0 0.0
    %1001 = vmatpush2.msra.mxu0 0.0
    %1002 = vmatprep.mubr.f32.mxu0 0.0
    %1003 = vmatmul.mubr.f32.gmra.mxu0 %v936
    %v1004 = vpop.f32.mrf.mxu0
    %v1005 = vadd.f32 0.0, %v1004
    %v1006 = vpop.f32.mrf.mxu0
    %1007 = vdwg.mxu0
    %v1008 = vadd.f32 %v935, %v1005
    %v1009 = vtanh.pop %v1008
    %v1010 = vxor.u32 %v1008, 2147483648
    %v1011 = vmul.f32 %v1010, 1.442695
    %v1012 = vpow.pop %v1011
    %v1013 = vadd.f32 %v1012, 1.0
    %v1014 = vrcp.pop %v1013
    %v1015 = vmul.f32 1.0, %v1014
    %v1016 = vsel %vm191, %v1009, %v1015
    %v1017 = vmul.f32 %v1016, %v921
    %1019 = vrot.lane.b32.xlu0 %v1016, 64
    %v1020 = vpop.permute.xlu0 %1019
    %v1022 = vmul.f32 %v1016, %v1020
    %1024 = vrot.lane.b32.xlu0 %v1022, 32
    %v1025 = vpop.permute.xlu0 %1024
    %v1027 = vadd.f32 %v1017, %v1025
    %v1028 = vtanh.pop %v1027
    %1030 = vrot.lane.b32.xlu0 %v1028, 64
    %v1031 = vpop.permute.xlu0 %1030
    %v1033 = vmul.f32 %v1016, %v1031
    %1035 = vrot.lane.b32.xlu0 %v1033, 32
    %v1036 = vpop.permute.xlu0 %1035
    %s1038 = scalar_lea.vmem [#allocation3], 56
    %1039 = vst.msk [vmem:[%s1038] sm:$0xff] %vm193, %v1036
    %v1040 = vld [vmem:[#allocation3] sm:$0xff]
    %v1041 = vld [vmem:[#allocation3 + $0x8] sm:$0xff]
    %v1042 = vld [vmem:[#allocation3 + $0x10] sm:$0xff]
    %v1043 = vld [vmem:[#allocation3 + $0x18] sm:$0xff]
    %v1044 = vld [vmem:[#allocation3 + $0x20] sm:$0xff]
    %v1045 = vld [vmem:[#allocation3 + $0x28] sm:$0xff]
    %v1046 = vld [vmem:[#allocation3 + $0x30] sm:$0xff]
    %v1047 = vld [vmem:[#allocation3 + $0x38] sm:$0xff]
    %v1048 = vld [vmem:[%s4] sm:$0xff]
    %v1049 = vld [vmem:[%s4 + $0x8] sm:$0xff]
    %v1050 = vld [vmem:[%s4 + $0x10] sm:$0xff]
    %v1051 = vld [vmem:[%s4 + $0x18] sm:$0xff]
    %v1052 = vld [vmem:[%s5] sm:$0x1]
    %v1054 = vlaneseq
    %v1055 = vshrl.u32 %v1054, 7
    %v1056 = vsub.s32 0, %v1055
    %v1057 = vrot.slane %v1052, %v1056
    %v1060 = vsel %vm193, %v1040, 0
    %v1063 = vsel %vm193, %v1041, 0
    %v1066 = vsel %vm193, %v1042, 0
    %v1069 = vsel %vm193, %v1043, 0
    %v1072 = vsel %vm193, %v1044, 0
    %v1075 = vsel %vm193, %v1045, 0
    %v1078 = vsel %vm193, %v1046, 0
    %v1081 = vsel %vm193, %v1047, 0
    %1083 = vmatprep.subr.mxu0 0.0
    %1084 = vmatpush1.msra.mxu0 0.0
    %1085 = vmatprep.subr.mxu0 0.0
    %1086 = vmatpush1.msra.mxu0 0.0
    %1087 = vmatprep.subr.mxu0 0.0
    %1088 = vmatpush1.msra.mxu0 0.0
    %1089 = vmatprep.subr.mxu0 0.0
    %1090 = vmatpush1.msra.mxu0 0.0
    %1091 = vmatprep.subr.mxu0 0.0
    %1092 = vmatpush1.msra.mxu0 0.0
    %1093 = vmatprep.subr.mxu0 0.0
    %1094 = vmatpush1.msra.mxu0 0.0
    %1095 = vmatprep.subr.mxu0 0.0
    %1096 = vmatpush1.msra.mxu0 0.0
    %1097 = vmatprep.subr.mxu0 0.0
    %1098 = vmatpush1.msra.mxu0 0.0
    %1099 = vmatprep.subr.mxu0 0.0
    %1100 = vmatpush1.msra.mxu0 0.0
    %1101 = vmatprep.subr.mxu0 0.0
    %1102 = vmatpush1.msra.mxu0 0.0
    %1103 = vmatprep.subr.mxu0 0.0
    %1104 = vmatpush1.msra.mxu0 0.0
    %1105 = vmatprep.subr.mxu0 0.0
    %1106 = vmatpush1.msra.mxu0 0.0
    %1107 = vmatprep.subr.mxu0 0.0
    %1108 = vmatpush1.msra.mxu0 %v1051
    %1109 = vmatprep.subr.mxu0 0.0
    %1110 = vmatpush1.msra.mxu0 %v1050
    %1111 = vmatprep.subr.mxu0 0.0
    %1112 = vmatpush1.msra.mxu0 %v1049
    %1113 = vmatprep.subr.mxu0 0.0
    %1114 = vmatpush1.msra.mxu0 %v1048
    %1115 = vmatprep.subr.mxu0 0.0
    %1116 = vmatpush2.msra.mxu0 0.0
    %1117 = vmatprep.subr.mxu0 0.0
    %1118 = vmatpush2.msra.mxu0 0.0
    %1119 = vmatprep.subr.mxu0 0.0
    %1120 = vmatpush2.msra.mxu0 0.0
    %1121 = vmatprep.subr.mxu0 0.0
    %1122 = vmatpush2.msra.mxu0 0.0
    %1123 = vmatprep.subr.mxu0 0.0
    %1124 = vmatpush2.msra.mxu0 0.0
    %1125 = vmatprep.subr.mxu0 0.0
    %1126 = vmatpush2.msra.mxu0 0.0
    %1127 = vmatprep.subr.mxu0 0.0
    %1128 = vmatpush2.msra.mxu0 0.0
    %1129 = vmatprep.subr.mxu0 0.0
    %1130 = vmatpush2.msra.mxu0 0.0
    %1131 = vmatprep.subr.mxu0 0.0
    %1132 = vmatpush2.msra.mxu0 0.0
    %1133 = vmatprep.subr.mxu0 0.0
    %1134 = vmatpush2.msra.mxu0 0.0
    %1135 = vmatprep.subr.mxu0 0.0
    %1136 = vmatpush2.msra.mxu0 0.0
    %1137 = vmatprep.subr.mxu0 0.0
    %1138 = vmatpush2.msra.mxu0 0.0
    %1139 = vmatprep.subr.mxu0 0.0
    %1140 = vmatpush2.msra.mxu0 0.0
    %1141 = vmatprep.subr.mxu0 0.0
    %1142 = vmatpush2.msra.mxu0 0.0
    %1143 = vmatprep.subr.mxu0 0.0
    %1144 = vmatpush2.msra.mxu0 0.0
    %1145 = vmatprep.subr.mxu0 0.0
    %1146 = vmatpush2.msra.mxu0 0.0
    %1147 = vmatprep.mubr.f32.mxu0 0.0
    %1148 = vmatmul.mubr.f32.gmra.mxu0 %v1060
    %v1149 = vpop.f32.mrf.mxu0
    %v1150 = vadd.f32 %v1057, %v1149
    %v1151 = vpop.f32.mrf.mxu0
    %1152 = vmatprep.mubr.f32.mxu0 0.0
    %1153 = vmatmul.mubr.f32.gmra.mxu0 %v1063
    %v1154 = vpop.f32.mrf.mxu0
    %v1155 = vadd.f32 %v1057, %v1154
    %v1156 = vpop.f32.mrf.mxu0
    %1157 = vmatprep.mubr.f32.mxu0 0.0
    %1158 = vmatmul.mubr.f32.gmra.mxu0 %v1066
    %v1159 = vpop.f32.mrf.mxu0
    %v1160 = vadd.f32 %v1057, %v1159
    %v1161 = vpop.f32.mrf.mxu0
    %1162 = vmatprep.mubr.f32.mxu0 0.0
    %1163 = vmatmul.mubr.f32.gmra.mxu0 %v1069
    %v1164 = vpop.f32.mrf.mxu0
    %v1165 = vadd.f32 %v1057, %v1164
    %v1166 = vpop.f32.mrf.mxu0
    %1167 = vmatprep.mubr.f32.mxu0 0.0
    %1168 = vmatmul.mubr.f32.gmra.mxu0 %v1072
    %v1169 = vpop.f32.mrf.mxu0
    %v1170 = vadd.f32 %v1057, %v1169
    %v1171 = vpop.f32.mrf.mxu0
    %1172 = vmatprep.mubr.f32.mxu0 0.0
    %1173 = vmatmul.mubr.f32.gmra.mxu0 %v1075
    %v1174 = vpop.f32.mrf.mxu0
    %v1175 = vadd.f32 %v1057, %v1174
    %v1176 = vpop.f32.mrf.mxu0
    %1177 = vmatprep.mubr.f32.mxu0 0.0
    %1178 = vmatmul.mubr.f32.gmra.mxu0 %v1078
    %v1179 = vpop.f32.mrf.mxu0
    %v1180 = vadd.f32 %v1057, %v1179
    %v1181 = vpop.f32.mrf.mxu0
    %1182 = vmatprep.mubr.f32.mxu0 0.0
    %1183 = vmatmul.mubr.f32.gmra.mxu0 %v1081
    %v1184 = vpop.f32.mrf.mxu0
    %v1185 = vadd.f32 %v1057, %v1184
    %v1186 = vpop.f32.mrf.mxu0
    %1187 = vdwg.mxu0
    %1188 = vst [vmem:[#allocation4] sm:$0xff] %v1150
    %1189 = vst [vmem:[#allocation4 + $0x8] sm:$0xff] %v1155
    %1190 = vst [vmem:[#allocation4 + $0x10] sm:$0xff] %v1160
    %1191 = vst [vmem:[#allocation4 + $0x18] sm:$0xff] %v1165
    %1192 = vst [vmem:[#allocation4 + $0x20] sm:$0xff] %v1170
    %1193 = vst [vmem:[#allocation4 + $0x28] sm:$0xff] %v1175
    %1194 = vst [vmem:[#allocation4 + $0x30] sm:$0xff] %v1180
    %1195 = vst [vmem:[#allocation4 + $0x38] sm:$0xff] %v1185
    // Predicated region
    $region26: #{tpu_custom_call.1} parent=1 // pred_check
      _
    $region27: #{tpu_custom_call.1} parent=1 // pred_check_branch
      %1197 = sbr.rel (0) target = $region29
    $region28: #{tpu_custom_call.1} parent=1 // pred_region
      %s1199 = ssub.s32 1024, 1024
      %1200 = vsyncadd [#allocation5], %s1199
      %s1201 = sshll.u32 [#allocation4], 4
      %s1202 = int_to_ptr.vmem [resolvable:$true] %s1201
      %1207 = dma.vmem_to_hbm [thread:$0]  %s1202, 1024, %s6, [#allocation5], 128, 128, 8
    $region29: #{tpu_custom_call.1} parent=1 // pred_fallthru
      _
    // Predicated region
    $region30: #{tpu_custom_call.1} parent=1 // pred_check
      _
    $region31: #{tpu_custom_call.1} parent=1 // pred_check_branch
      %1209 = sbr.rel (0) target = $region33
    $region32: #{tpu_custom_call.1} parent=1 // pred_region
      %1210 = dma.done [#allocation5], 1024
    $region33: #{tpu_custom_call.1} parent=1 // pred_fallthru
      _
    %1211 = vsyncpa [#allocation5], 1

</llo_original>
